<compile_context>
chip_gen: v6e
topology: v6e:2x2x1
jax: 0.10.0
libtpu: 0.0.40
codegen_flags: <defaults>
</compile_context>

<pallas_src>
import jax
import jax.numpy as jnp
from jax.experimental import pallas as pl
from jax.experimental.pallas import tpu as pltpu


# ----------------------------------------------------------------------------
# Fused kernel: hoisted input projection -> unrolled LSTM recurrence with the
# head folded into each step -> action-row head -> per-batch mean.
# ----------------------------------------------------------------------------
def fused_forward_kernel(x_ref, ae_ref, hc0_ref, wlstm_ref, whead_ref, out_ref):
    """
    Shapes (all full blocks, resident in VMEM; Bp = sublane-padded batch):
      x_ref     : (P*Bp, I)       time-major flattened LSTM input
      ae_ref    : (A*Bp, H)       action embedding, slot-major flattened
      hc0_ref   : (2*Bp, H)       [h0 ; c0]
      wlstm_ref : (I+H+1, 4H)     [W_ih^T ; W_hh^T ; (b_ih+b_hh)]
      whead_ref : (H+1, O)        [W_lin^T ; b_lin]
      out_ref   : (Bp, O)         sum-of-softmax-rows / (P+A)
    """
    Bp2, H = hc0_ref.shape
    Bp = Bp2 // 2
    I = x_ref.shape[1]
    P = x_ref.shape[0] // Bp
    A = ae_ref.shape[0] // Bp
    O = whead_ref.shape[1]

    # ---- unpack packed parameter slabs (static sublane slices) -------------
    wih = wlstm_ref[0:I, :]                                   # (I, 4H)
    whh = wlstm_ref[I:I + H, :]                               # (H, 4H)
    b_lstm = wlstm_ref[I + H:I + H + 1, :]                    # (1, 4H)
    wlin = whead_ref[0:H, :]                                  # (H, O)
    blin1 = whead_ref[H:H + 1, :]                             # (1, O)
    blin_b = jnp.broadcast_to(blin1, (Bp, O))                 # hoisted out of loop

    h = hc0_ref[0:Bp, :]
    c = hc0_ref[Bp:2 * Bp, :]

    # ---- hoisted input projection: one matmul for all time steps -----------
    xproj = (jnp.dot(x_ref[...], wih,
                     preferred_element_type=jnp.float32)
             + b_lstm)                                        # (P*Bp, 4H)

    acc = jnp.zeros((Bp, O), jnp.float32)

    # ---- LSTM recurrence, statically unrolled over P steps ------------------
    # Only h_prev @ W_hh is on the serial chain; the per-step head work is
    # independent of h_{t+1} and overlaps with the next step's matmul.
    for t in range(P):
        gates = xproj[t * Bp:(t + 1) * Bp, :] + jnp.dot(
            h, whh, preferred_element_type=jnp.float32)       # (Bp, 4H)
        # One sigmoid over the whole gates vreg; PyTorch gate order [i, f, g, o].
        sig = jax.nn.sigmoid(gates)
        i_g = sig[:, 0 * H:1 * H]
        f_g = sig[:, 1 * H:2 * H]
        o_g = sig[:, 3 * H:4 * H]
        g_g = jnp.tanh(gates[:, 2 * H:3 * H])
        c = f_g * c + i_g * g_g
        h = o_g * jnp.tanh(c)

        # Head folded into the step: linear -> softmax -> accumulate.
        logits_t = jnp.dot(h, wlin,
                           preferred_element_type=jnp.float32) + blin_b
        m = jnp.max(logits_t, axis=-1, keepdims=True)
        e = jnp.exp(logits_t - m)
        acc = acc + e / jnp.sum(e, axis=-1, keepdims=True)

    # ---- action-embedding slots: one flat matmul + softmax + per-batch sum --
    logits_a = (jnp.dot(ae_ref[...], wlin,
                        preferred_element_type=jnp.float32)
                + blin1)                                      # (A*Bp, O)
    m_a = jnp.max(logits_a, axis=-1, keepdims=True)
    e_a = jnp.exp(logits_a - m_a)
    probs_a = e_a / jnp.sum(e_a, axis=-1, keepdims=True)
    for a in range(A):
        acc = acc + probs_a[a * Bp:(a + 1) * Bp, :]           # tile-aligned slices

    out_ref[...] = acc * (1.0 / (P + A))


# ----------------------------------------------------------------------------
# Wrapper: layout plumbing (pad batch to 8 sublanes, pack params) + one call.
# ----------------------------------------------------------------------------
def _round_up(n, m):
    return ((n + m - 1) // m) * m


@jax.jit
def lstm_encoding_history_forward(x, action_embedding, params, h0, c0):
    # x: (B, P, I), action_embedding: (B, A, H), h0/c0: (B, H)
    B, P, I = x.shape
    _, A, H = action_embedding.shape
    O = params['w_lin_t'].shape[-1]
    Bp = max(8, _round_up(B, 8))          # pad batch to full 8-sublane tiles
    pad = Bp - B

    # Tiny one-off layout plumbing in XLA so the kernel sees 2-D slabs.
    x_tm = jnp.transpose(x, (1, 0, 2))                                 # (P, B, I)
    x_tm = jnp.pad(x_tm, ((0, 0), (0, pad), (0, 0))).reshape(P * Bp, I)
    ae_sm = jnp.transpose(action_embedding, (1, 0, 2))                 # (A, B, H)
    ae_sm = jnp.pad(ae_sm, ((0, 0), (0, pad), (0, 0))).reshape(A * Bp, H)
    hc0 = jnp.concatenate([jnp.pad(h0, ((0, pad), (0, 0))),
                           jnp.pad(c0, ((0, pad), (0, 0)))], axis=0)   # (2Bp, H)

    # Packed parameter slabs (fewer input DMAs).  For these shapes the
    # segment boundaries (I=8, I+H=40, H=32) are 8-sublane aligned.
    w_lstm = jnp.concatenate([params['w_ih_t'], params['w_hh_t'],
                              params['b_lstm']], axis=0)               # (I+H+1, 4H)
    w_head = jnp.concatenate([params['w_lin_t'], params['b_lin']],
                             axis=0)                                   # (H+1, O)

    full = lambda shape: pl.BlockSpec(shape, lambda i, s=shape: (0,) * len(s))

    out = pl.pallas_call(
        fused_forward_kernel,
        out_shape=jax.ShapeDtypeStruct((Bp, O), jnp.float32),
        grid_spec=pltpu.PrefetchScalarGridSpec(
            num_scalar_prefetch=0,
            grid=(1,),
            in_specs=[
                full((P * Bp, I)),          # x_tm
                full((A * Bp, H)),          # ae_sm
                full((2 * Bp, H)),          # [h0; c0]
                full((I + H + 1, 4 * H)),   # [W_ih^T; W_hh^T; b]
                full((H + 1, O)),           # [W_lin^T; b_lin]
            ],
            out_specs=full((Bp, O)),
        ),
        compiler_params=pltpu.CompilerParams(
            dimension_semantics=("arbitrary",)),
    )(x_tm, ae_sm, hc0, w_lstm, w_head)

    return out[:B]                        # drop padded batch rows


# ----------------------------------------------------------------------------
# Pure-JAX reference (for correctness check)
# ----------------------------------------------------------------------------
def reference_forward(x, action_embedding, params, h0, c0):
    B, P, I = x.shape
    H = h0.shape[-1]
    b = params['b_lstm'][0]
    h, c = h0, c0
    hs = []
    for t in range(P):
        gates = x[:, t, :] @ params['w_ih_t'] + h @ params['w_hh_t'] + b
        i_g = jax.nn.sigmoid(gates[:, 0 * H:1 * H])
        f_g = jax.nn.sigmoid(gates[:, 1 * H:2 * H])
        g_g = jnp.tanh(gates[:, 2 * H:3 * H])
        o_g = jax.nn.sigmoid(gates[:, 3 * H:4 * H])
        c = f_g * c + i_g * g_g
        h = o_g * jnp.tanh(c)
        hs.append(h)
    h_seq = jnp.stack(hs, axis=1)                                  # (B, P, H)
    cat = jnp.concatenate([h_seq, action_embedding], axis=1)       # (B, P+A, H)
    logits = cat @ params['w_lin_t'] + params['b_lin'][0]
    probs = jax.nn.softmax(logits, axis=-1)
    return probs.mean(axis=1)


if __name__ == "__main__":
    # Small shapes consistent with the module's forward.
    B = 2            # batch_size
    P = 6            # num_predicate (LSTM "time" axis because batch_first)
    I = 8            # seq_length == LSTM input_size
    H = 32           # hidden_size
    O = 16           # output_size
    A = 4            # number of action-embedding rows (concat along dim=1)

    key = jax.random.PRNGKey(0)
    keys = jax.random.split(key, 10)

    # Deterministic synthetic parameters (shapes from nn.LSTM / nn.Linear).
    w_ih = jax.random.normal(keys[0], (4 * H, I), jnp.float32) * 0.1   # weight_ih_l0
    w_hh = jax.random.normal(keys[1], (4 * H, H), jnp.float32) * 0.1   # weight_hh_l0
    b_ih = jax.random.normal(keys[2], (4 * H,), jnp.float32) * 0.1
    b_hh = jax.random.normal(keys[3], (4 * H,), jnp.float32) * 0.1
    w_lin = jax.random.normal(keys[4], (O, H), jnp.float32) * 0.1      # Linear.weight
    b_lin = jax.random.normal(keys[5], (O,), jnp.float32) * 0.1        # Linear.bias

    params = {
        'w_ih_t': jnp.transpose(w_ih),                 # (I, 4H)
        'w_hh_t': jnp.transpose(w_hh),                 # (H, 4H)
        'b_lstm': (b_ih + b_hh).reshape(1, 4 * H),     # (1, 4H)
        'w_lin_t': jnp.transpose(w_lin),               # (H, O)
        'b_lin': b_lin.reshape(1, O),                  # (1, O)
    }

    # Inputs.
    x = jax.random.normal(keys[6], (B, P, I), jnp.float32)
    action_embedding = jax.random.normal(keys[7], (B, A, H), jnp.float32)
    # TODO(synk): h_0/c_0 are torch.randn in the reference forward; here they
    # are deterministic PRNGKey normals (documented divergence).
    h0 = jax.random.normal(keys[8], (B, H), jnp.float32)
    c0 = jax.random.normal(keys[9], (B, H), jnp.float32)

    out = lstm_encoding_history_forward(x, action_embedding, params, h0, c0)
    out = jax.block_until_ready(out)
    ref = reference_forward(x, action_embedding, params, h0, c0)

    assert out.shape == (B, O), out.shape
    # rows are means of softmax rows -> each sums to ~1 (exact divide now)
    assert jnp.allclose(jnp.sum(out, axis=-1), 1.0, atol=1e-4)
    assert jnp.allclose(out, ref, rtol=0, atol=1e-4), float(jnp.max(jnp.abs(out - ref)))
    print("KERNEL_OK")
</pallas_src>

<mosaic_0001>
module attributes {stable_mosaic.version = 11 : i64} {
  func.func @fused_forward_kernel(%arg0: i32, %arg1: memref<48x8xf32, #tpu.memory_space<vmem>>, %arg2: memref<32x32xf32, #tpu.memory_space<vmem>>, %arg3: memref<16x32xf32, #tpu.memory_space<vmem>>, %arg4: memref<41x128xf32, #tpu.memory_space<vmem>>, %arg5: memref<33x16xf32, #tpu.memory_space<vmem>>, %arg6: memref<8x16xf32, #tpu.memory_space<vmem>>) attributes {dimension_semantics = [#tpu.dimension_semantics<arbitrary>], iteration_bounds = array<i64: 1>, scalar_prefetch = 0 : i64, scratch_operands = 0 : i64, tpu.core_type = #tpu.core_type<tc>, window_params = [{pipeline_mode = #tpu.pipeline_mode<synchronous>, transform_indices = @transform_0, window_bounds = array<i64: 48, 8>}, {pipeline_mode = #tpu.pipeline_mode<synchronous>, transform_indices = @transform_1, window_bounds = array<i64: 32, 32>}, {pipeline_mode = #tpu.pipeline_mode<synchronous>, transform_indices = @transform_2, window_bounds = array<i64: 16, 32>}, {pipeline_mode = #tpu.pipeline_mode<synchronous>, transform_indices = @transform_3, window_bounds = array<i64: 41, 128>}, {pipeline_mode = #tpu.pipeline_mode<synchronous>, transform_indices = @transform_4, window_bounds = array<i64: 33, 16>}, {pipeline_mode = #tpu.pipeline_mode<synchronous>, transform_indices = @transform_5, window_bounds = array<i64: 8, 16>}]} {
    %c0 = arith.constant 0 : index
    %c0_0 = arith.constant 0 : index
    %0 = vector.load %arg4[%c0, %c0_0] : memref<41x128xf32, #tpu.memory_space<vmem>>, vector<8x128xf32>
    %c8 = arith.constant 8 : index
    %c0_1 = arith.constant 0 : index
    %1 = vector.load %arg4[%c8, %c0_1] : memref<41x128xf32, #tpu.memory_space<vmem>>, vector<32x128xf32>
    %c40 = arith.constant 40 : index
    %c0_2 = arith.constant 0 : index
    %2 = vector.load %arg4[%c40, %c0_2] : memref<41x128xf32, #tpu.memory_space<vmem>>, vector<1x128xf32>
    %c0_3 = arith.constant 0 : index
    %c0_4 = arith.constant 0 : index
    %3 = vector.load %arg5[%c0_3, %c0_4] : memref<33x16xf32, #tpu.memory_space<vmem>>, vector<32x16xf32>
    %c32 = arith.constant 32 : index
    %c0_5 = arith.constant 0 : index
    %4 = vector.load %arg5[%c32, %c0_5] : memref<33x16xf32, #tpu.memory_space<vmem>>, vector<1x16xf32>
    %5 = vector.shape_cast %4 : vector<1x16xf32> to vector<1x16xf32>
    %6 = vector.broadcast %5 : vector<1x16xf32> to vector<8x16xf32>
    %c0_6 = arith.constant 0 : index
    %c0_7 = arith.constant 0 : index
    %7 = vector.load %arg3[%c0_6, %c0_7] : memref<16x32xf32, #tpu.memory_space<vmem>>, vector<8x32xf32>
    %c8_8 = arith.constant 8 : index
    %c0_9 = arith.constant 0 : index
    %8 = vector.load %arg3[%c8_8, %c0_9] : memref<16x32xf32, #tpu.memory_space<vmem>>, vector<8x32xf32>
    %c0_10 = arith.constant 0 : index
    %c0_11 = arith.constant 0 : index
    %9 = vector.load %arg1[%c0_10, %c0_11] : memref<48x8xf32, #tpu.memory_space<vmem>>, vector<48x8xf32>
    %cst = arith.constant dense<0.000000e+00> : vector<48x128xf32>
    %10 = tpu.matmul %9, %0, %cst {dimension_numbers = #tpu.dot_dimension_numbers<[1], [0], [0], [1], [0, 0, 1, 1], [], []>} : vector<48x8xf32>, vector<8x128xf32>, vector<48x128xf32> -> vector<48x128xf32>
    %11 = vector.broadcast %2 : vector<1x128xf32> to vector<48x128xf32>
    %12 = arith.addf %10, %11 : vector<48x128xf32>
    %cst_12 = arith.constant 0.000000e+00 : f32
    %13 = vector.broadcast %cst_12 : f32 to vector<8x16xf32>
    %14 = vector.extract_strided_slice %12 {offsets = [0, 0], sizes = [8, 128], strides = [1, 1]} : vector<48x128xf32> to vector<8x128xf32>
    %cst_13 = arith.constant dense<0.000000e+00> : vector<8x128xf32>
    %15 = tpu.matmul %7, %1, %cst_13 {dimension_numbers = #tpu.dot_dimension_numbers<[1], [0], [0], [1], [0, 0, 1, 1], [], []>} : vector<8x32xf32>, vector<32x128xf32>, vector<8x128xf32> -> vector<8x128xf32>
    %16 = arith.addf %14, %15 : vector<8x128xf32>
    %17 = arith.negf %16 : vector<8x128xf32>
    %18 = math.exp %17 : vector<8x128xf32>
    %cst_14 = arith.constant 1.000000e+00 : f32
    %19 = vector.broadcast %cst_14 : f32 to vector<8x128xf32>
    %20 = arith.addf %19, %18 : vector<8x128xf32>
    %21 = arith.divf %19, %20 : vector<8x128xf32>
    %22 = vector.extract_strided_slice %21 {offsets = [0, 0], sizes = [8, 32], strides = [1, 1]} : vector<8x128xf32> to vector<8x32xf32>
    %23 = vector.extract_strided_slice %21 {offsets = [0, 32], sizes = [8, 32], strides = [1, 1]} : vector<8x128xf32> to vector<8x32xf32>
    %24 = vector.extract_strided_slice %21 {offsets = [0, 96], sizes = [8, 32], strides = [1, 1]} : vector<8x128xf32> to vector<8x32xf32>
    %25 = vector.extract_strided_slice %16 {offsets = [0, 64], sizes = [8, 32], strides = [1, 1]} : vector<8x128xf32> to vector<8x32xf32>
    %26 = math.tanh %25 : vector<8x32xf32>
    %27 = arith.mulf %23, %8 : vector<8x32xf32>
    %28 = arith.mulf %22, %26 : vector<8x32xf32>
    %29 = arith.addf %27, %28 : vector<8x32xf32>
    %30 = math.tanh %29 : vector<8x32xf32>
    %31 = arith.mulf %24, %30 : vector<8x32xf32>
    %cst_15 = arith.constant dense<0.000000e+00> : vector<8x16xf32>
    %32 = tpu.matmul %31, %3, %cst_15 {dimension_numbers = #tpu.dot_dimension_numbers<[1], [0], [0], [1], [0, 0, 1, 1], [], []>} : vector<8x32xf32>, vector<32x16xf32>, vector<8x16xf32> -> vector<8x16xf32>
    %33 = arith.addf %32, %6 : vector<8x16xf32>
    %cst_16 = arith.constant dense<0xFF800000> : vector<8xf32>
    %34 = vector.multi_reduction <maximumf>, %33, %cst_16 [1] : vector<8x16xf32> to vector<8xf32>
    %35 = vector.shape_cast %34 : vector<8xf32> to vector<8x1xf32>
    %36 = vector.broadcast %35 : vector<8x1xf32> to vector<8x16xf32>
    %37 = arith.subf %33, %36 : vector<8x16xf32>
    %38 = math.exp %37 : vector<8x16xf32>
    %cst_17 = arith.constant dense<0.000000e+00> : vector<8xf32>
    %39 = vector.multi_reduction <add>, %38, %cst_17 [1] : vector<8x16xf32> to vector<8xf32>
    %40 = vector.shape_cast %39 : vector<8xf32> to vector<8x1xf32>
    %41 = vector.broadcast %40 : vector<8x1xf32> to vector<8x16xf32>
    %42 = arith.divf %38, %41 : vector<8x16xf32>
    %43 = arith.addf %13, %42 : vector<8x16xf32>
    %44 = vector.extract_strided_slice %12 {offsets = [8, 0], sizes = [8, 128], strides = [1, 1]} : vector<48x128xf32> to vector<8x128xf32>
    %cst_18 = arith.constant dense<0.000000e+00> : vector<8x128xf32>
    %45 = tpu.matmul %31, %1, %cst_18 {dimension_numbers = #tpu.dot_dimension_numbers<[1], [0], [0], [1], [0, 0, 1, 1], [], []>} : vector<8x32xf32>, vector<32x128xf32>, vector<8x128xf32> -> vector<8x128xf32>
    %46 = arith.addf %44, %45 : vector<8x128xf32>
    %47 = arith.negf %46 : vector<8x128xf32>
    %48 = math.exp %47 : vector<8x128xf32>
    %cst_19 = arith.constant 1.000000e+00 : f32
    %49 = vector.broadcast %cst_19 : f32 to vector<8x128xf32>
    %50 = arith.addf %49, %48 : vector<8x128xf32>
    %51 = arith.divf %49, %50 : vector<8x128xf32>
    %52 = vector.extract_strided_slice %51 {offsets = [0, 0], sizes = [8, 32], strides = [1, 1]} : vector<8x128xf32> to vector<8x32xf32>
    %53 = vector.extract_strided_slice %51 {offsets = [0, 32], sizes = [8, 32], strides = [1, 1]} : vector<8x128xf32> to vector<8x32xf32>
    %54 = vector.extract_strided_slice %51 {offsets = [0, 96], sizes = [8, 32], strides = [1, 1]} : vector<8x128xf32> to vector<8x32xf32>
    %55 = vector.extract_strided_slice %46 {offsets = [0, 64], sizes = [8, 32], strides = [1, 1]} : vector<8x128xf32> to vector<8x32xf32>
    %56 = math.tanh %55 : vector<8x32xf32>
    %57 = arith.mulf %53, %29 : vector<8x32xf32>
    %58 = arith.mulf %52, %56 : vector<8x32xf32>
    %59 = arith.addf %57, %58 : vector<8x32xf32>
    %60 = math.tanh %59 : vector<8x32xf32>
    %61 = arith.mulf %54, %60 : vector<8x32xf32>
    %cst_20 = arith.constant dense<0.000000e+00> : vector<8x16xf32>
    %62 = tpu.matmul %61, %3, %cst_20 {dimension_numbers = #tpu.dot_dimension_numbers<[1], [0], [0], [1], [0, 0, 1, 1], [], []>} : vector<8x32xf32>, vector<32x16xf32>, vector<8x16xf32> -> vector<8x16xf32>
    %63 = arith.addf %62, %6 : vector<8x16xf32>
    %cst_21 = arith.constant dense<0xFF800000> : vector<8xf32>
    %64 = vector.multi_reduction <maximumf>, %63, %cst_21 [1] : vector<8x16xf32> to vector<8xf32>
    %65 = vector.shape_cast %64 : vector<8xf32> to vector<8x1xf32>
    %66 = vector.broadcast %65 : vector<8x1xf32> to vector<8x16xf32>
    %67 = arith.subf %63, %66 : vector<8x16xf32>
    %68 = math.exp %67 : vector<8x16xf32>
    %cst_22 = arith.constant dense<0.000000e+00> : vector<8xf32>
    %69 = vector.multi_reduction <add>, %68, %cst_22 [1] : vector<8x16xf32> to vector<8xf32>
    %70 = vector.shape_cast %69 : vector<8xf32> to vector<8x1xf32>
    %71 = vector.broadcast %70 : vector<8x1xf32> to vector<8x16xf32>
    %72 = arith.divf %68, %71 : vector<8x16xf32>
    %73 = arith.addf %43, %72 : vector<8x16xf32>
    %74 = vector.extract_strided_slice %12 {offsets = [16, 0], sizes = [8, 128], strides = [1, 1]} : vector<48x128xf32> to vector<8x128xf32>
    %cst_23 = arith.constant dense<0.000000e+00> : vector<8x128xf32>
    %75 = tpu.matmul %61, %1, %cst_23 {dimension_numbers = #tpu.dot_dimension_numbers<[1], [0], [0], [1], [0, 0, 1, 1], [], []>} : vector<8x32xf32>, vector<32x128xf32>, vector<8x128xf32> -> vector<8x128xf32>
    %76 = arith.addf %74, %75 : vector<8x128xf32>
    %77 = arith.negf %76 : vector<8x128xf32>
    %78 = math.exp %77 : vector<8x128xf32>
    %cst_24 = arith.constant 1.000000e+00 : f32
    %79 = vector.broadcast %cst_24 : f32 to vector<8x128xf32>
    %80 = arith.addf %79, %78 : vector<8x128xf32>
    %81 = arith.divf %79, %80 : vector<8x128xf32>
    %82 = vector.extract_strided_slice %81 {offsets = [0, 0], sizes = [8, 32], strides = [1, 1]} : vector<8x128xf32> to vector<8x32xf32>
    %83 = vector.extract_strided_slice %81 {offsets = [0, 32], sizes = [8, 32], strides = [1, 1]} : vector<8x128xf32> to vector<8x32xf32>
    %84 = vector.extract_strided_slice %81 {offsets = [0, 96], sizes = [8, 32], strides = [1, 1]} : vector<8x128xf32> to vector<8x32xf32>
    %85 = vector.extract_strided_slice %76 {offsets = [0, 64], sizes = [8, 32], strides = [1, 1]} : vector<8x128xf32> to vector<8x32xf32>
    %86 = math.tanh %85 : vector<8x32xf32>
    %87 = arith.mulf %83, %59 : vector<8x32xf32>
    %88 = arith.mulf %82, %86 : vector<8x32xf32>
    %89 = arith.addf %87, %88 : vector<8x32xf32>
    %90 = math.tanh %89 : vector<8x32xf32>
    %91 = arith.mulf %84, %90 : vector<8x32xf32>
    %cst_25 = arith.constant dense<0.000000e+00> : vector<8x16xf32>
    %92 = tpu.matmul %91, %3, %cst_25 {dimension_numbers = #tpu.dot_dimension_numbers<[1], [0], [0], [1], [0, 0, 1, 1], [], []>} : vector<8x32xf32>, vector<32x16xf32>, vector<8x16xf32> -> vector<8x16xf32>
    %93 = arith.addf %92, %6 : vector<8x16xf32>
    %cst_26 = arith.constant dense<0xFF800000> : vector<8xf32>
    %94 = vector.multi_reduction <maximumf>, %93, %cst_26 [1] : vector<8x16xf32> to vector<8xf32>
    %95 = vector.shape_cast %94 : vector<8xf32> to vector<8x1xf32>
    %96 = vector.broadcast %95 : vector<8x1xf32> to vector<8x16xf32>
    %97 = arith.subf %93, %96 : vector<8x16xf32>
    %98 = math.exp %97 : vector<8x16xf32>
    %cst_27 = arith.constant dense<0.000000e+00> : vector<8xf32>
    %99 = vector.multi_reduction <add>, %98, %cst_27 [1] : vector<8x16xf32> to vector<8xf32>
    %100 = vector.shape_cast %99 : vector<8xf32> to vector<8x1xf32>
    %101 = vector.broadcast %100 : vector<8x1xf32> to vector<8x16xf32>
    %102 = arith.divf %98, %101 : vector<8x16xf32>
    %103 = arith.addf %73, %102 : vector<8x16xf32>
    %104 = vector.extract_strided_slice %12 {offsets = [24, 0], sizes = [8, 128], strides = [1, 1]} : vector<48x128xf32> to vector<8x128xf32>
    %cst_28 = arith.constant dense<0.000000e+00> : vector<8x128xf32>
    %105 = tpu.matmul %91, %1, %cst_28 {dimension_numbers = #tpu.dot_dimension_numbers<[1], [0], [0], [1], [0, 0, 1, 1], [], []>} : vector<8x32xf32>, vector<32x128xf32>, vector<8x128xf32> -> vector<8x128xf32>
    %106 = arith.addf %104, %105 : vector<8x128xf32>
    %107 = arith.negf %106 : vector<8x128xf32>
    %108 = math.exp %107 : vector<8x128xf32>
    %cst_29 = arith.constant 1.000000e+00 : f32
    %109 = vector.broadcast %cst_29 : f32 to vector<8x128xf32>
    %110 = arith.addf %109, %108 : vector<8x128xf32>
    %111 = arith.divf %109, %110 : vector<8x128xf32>
    %112 = vector.extract_strided_slice %111 {offsets = [0, 0], sizes = [8, 32], strides = [1, 1]} : vector<8x128xf32> to vector<8x32xf32>
    %113 = vector.extract_strided_slice %111 {offsets = [0, 32], sizes = [8, 32], strides = [1, 1]} : vector<8x128xf32> to vector<8x32xf32>
    %114 = vector.extract_strided_slice %111 {offsets = [0, 96], sizes = [8, 32], strides = [1, 1]} : vector<8x128xf32> to vector<8x32xf32>
    %115 = vector.extract_strided_slice %106 {offsets = [0, 64], sizes = [8, 32], strides = [1, 1]} : vector<8x128xf32> to vector<8x32xf32>
    %116 = math.tanh %115 : vector<8x32xf32>
    %117 = arith.mulf %113, %89 : vector<8x32xf32>
    %118 = arith.mulf %112, %116 : vector<8x32xf32>
    %119 = arith.addf %117, %118 : vector<8x32xf32>
    %120 = math.tanh %119 : vector<8x32xf32>
    %121 = arith.mulf %114, %120 : vector<8x32xf32>
    %cst_30 = arith.constant dense<0.000000e+00> : vector<8x16xf32>
    %122 = tpu.matmul %121, %3, %cst_30 {dimension_numbers = #tpu.dot_dimension_numbers<[1], [0], [0], [1], [0, 0, 1, 1], [], []>} : vector<8x32xf32>, vector<32x16xf32>, vector<8x16xf32> -> vector<8x16xf32>
    %123 = arith.addf %122, %6 : vector<8x16xf32>
    %cst_31 = arith.constant dense<0xFF800000> : vector<8xf32>
    %124 = vector.multi_reduction <maximumf>, %123, %cst_31 [1] : vector<8x16xf32> to vector<8xf32>
    %125 = vector.shape_cast %124 : vector<8xf32> to vector<8x1xf32>
    %126 = vector.broadcast %125 : vector<8x1xf32> to vector<8x16xf32>
    %127 = arith.subf %123, %126 : vector<8x16xf32>
    %128 = math.exp %127 : vector<8x16xf32>
    %cst_32 = arith.constant dense<0.000000e+00> : vector<8xf32>
    %129 = vector.multi_reduction <add>, %128, %cst_32 [1] : vector<8x16xf32> to vector<8xf32>
    %130 = vector.shape_cast %129 : vector<8xf32> to vector<8x1xf32>
    %131 = vector.broadcast %130 : vector<8x1xf32> to vector<8x16xf32>
    %132 = arith.divf %128, %131 : vector<8x16xf32>
    %133 = arith.addf %103, %132 : vector<8x16xf32>
    %134 = vector.extract_strided_slice %12 {offsets = [32, 0], sizes = [8, 128], strides = [1, 1]} : vector<48x128xf32> to vector<8x128xf32>
    %cst_33 = arith.constant dense<0.000000e+00> : vector<8x128xf32>
    %135 = tpu.matmul %121, %1, %cst_33 {dimension_numbers = #tpu.dot_dimension_numbers<[1], [0], [0], [1], [0, 0, 1, 1], [], []>} : vector<8x32xf32>, vector<32x128xf32>, vector<8x128xf32> -> vector<8x128xf32>
    %136 = arith.addf %134, %135 : vector<8x128xf32>
    %137 = arith.negf %136 : vector<8x128xf32>
    %138 = math.exp %137 : vector<8x128xf32>
    %cst_34 = arith.constant 1.000000e+00 : f32
    %139 = vector.broadcast %cst_34 : f32 to vector<8x128xf32>
    %140 = arith.addf %139, %138 : vector<8x128xf32>
    %141 = arith.divf %139, %140 : vector<8x128xf32>
    %142 = vector.extract_strided_slice %141 {offsets = [0, 0], sizes = [8, 32], strides = [1, 1]} : vector<8x128xf32> to vector<8x32xf32>
    %143 = vector.extract_strided_slice %141 {offsets = [0, 32], sizes = [8, 32], strides = [1, 1]} : vector<8x128xf32> to vector<8x32xf32>
    %144 = vector.extract_strided_slice %141 {offsets = [0, 96], sizes = [8, 32], strides = [1, 1]} : vector<8x128xf32> to vector<8x32xf32>
    %145 = vector.extract_strided_slice %136 {offsets = [0, 64], sizes = [8, 32], strides = [1, 1]} : vector<8x128xf32> to vector<8x32xf32>
    %146 = math.tanh %145 : vector<8x32xf32>
    %147 = arith.mulf %143, %119 : vector<8x32xf32>
    %148 = arith.mulf %142, %146 : vector<8x32xf32>
    %149 = arith.addf %147, %148 : vector<8x32xf32>
    %150 = math.tanh %149 : vector<8x32xf32>
    %151 = arith.mulf %144, %150 : vector<8x32xf32>
    %cst_35 = arith.constant dense<0.000000e+00> : vector<8x16xf32>
    %152 = tpu.matmul %151, %3, %cst_35 {dimension_numbers = #tpu.dot_dimension_numbers<[1], [0], [0], [1], [0, 0, 1, 1], [], []>} : vector<8x32xf32>, vector<32x16xf32>, vector<8x16xf32> -> vector<8x16xf32>
    %153 = arith.addf %152, %6 : vector<8x16xf32>
    %cst_36 = arith.constant dense<0xFF800000> : vector<8xf32>
    %154 = vector.multi_reduction <maximumf>, %153, %cst_36 [1] : vector<8x16xf32> to vector<8xf32>
    %155 = vector.shape_cast %154 : vector<8xf32> to vector<8x1xf32>
    %156 = vector.broadcast %155 : vector<8x1xf32> to vector<8x16xf32>
    %157 = arith.subf %153, %156 : vector<8x16xf32>
    %158 = math.exp %157 : vector<8x16xf32>
    %cst_37 = arith.constant dense<0.000000e+00> : vector<8xf32>
    %159 = vector.multi_reduction <add>, %158, %cst_37 [1] : vector<8x16xf32> to vector<8xf32>
    %160 = vector.shape_cast %159 : vector<8xf32> to vector<8x1xf32>
    %161 = vector.broadcast %160 : vector<8x1xf32> to vector<8x16xf32>
    %162 = arith.divf %158, %161 : vector<8x16xf32>
    %163 = arith.addf %133, %162 : vector<8x16xf32>
    %164 = vector.extract_strided_slice %12 {offsets = [40, 0], sizes = [8, 128], strides = [1, 1]} : vector<48x128xf32> to vector<8x128xf32>
    %cst_38 = arith.constant dense<0.000000e+00> : vector<8x128xf32>
    %165 = tpu.matmul %151, %1, %cst_38 {dimension_numbers = #tpu.dot_dimension_numbers<[1], [0], [0], [1], [0, 0, 1, 1], [], []>} : vector<8x32xf32>, vector<32x128xf32>, vector<8x128xf32> -> vector<8x128xf32>
    %166 = arith.addf %164, %165 : vector<8x128xf32>
    %167 = arith.negf %166 : vector<8x128xf32>
    %168 = math.exp %167 : vector<8x128xf32>
    %cst_39 = arith.constant 1.000000e+00 : f32
    %169 = vector.broadcast %cst_39 : f32 to vector<8x128xf32>
    %170 = arith.addf %169, %168 : vector<8x128xf32>
    %171 = arith.divf %169, %170 : vector<8x128xf32>
    %172 = vector.extract_strided_slice %171 {offsets = [0, 0], sizes = [8, 32], strides = [1, 1]} : vector<8x128xf32> to vector<8x32xf32>
    %173 = vector.extract_strided_slice %171 {offsets = [0, 32], sizes = [8, 32], strides = [1, 1]} : vector<8x128xf32> to vector<8x32xf32>
    %174 = vector.extract_strided_slice %171 {offsets = [0, 96], sizes = [8, 32], strides = [1, 1]} : vector<8x128xf32> to vector<8x32xf32>
    %175 = vector.extract_strided_slice %166 {offsets = [0, 64], sizes = [8, 32], strides = [1, 1]} : vector<8x128xf32> to vector<8x32xf32>
    %176 = math.tanh %175 : vector<8x32xf32>
    %177 = arith.mulf %173, %149 : vector<8x32xf32>
    %178 = arith.mulf %172, %176 : vector<8x32xf32>
    %179 = arith.addf %177, %178 : vector<8x32xf32>
    %180 = math.tanh %179 : vector<8x32xf32>
    %181 = arith.mulf %174, %180 : vector<8x32xf32>
    %cst_40 = arith.constant dense<0.000000e+00> : vector<8x16xf32>
    %182 = tpu.matmul %181, %3, %cst_40 {dimension_numbers = #tpu.dot_dimension_numbers<[1], [0], [0], [1], [0, 0, 1, 1], [], []>} : vector<8x32xf32>, vector<32x16xf32>, vector<8x16xf32> -> vector<8x16xf32>
    %183 = arith.addf %182, %6 : vector<8x16xf32>
    %cst_41 = arith.constant dense<0xFF800000> : vector<8xf32>
    %184 = vector.multi_reduction <maximumf>, %183, %cst_41 [1] : vector<8x16xf32> to vector<8xf32>
    %185 = vector.shape_cast %184 : vector<8xf32> to vector<8x1xf32>
    %186 = vector.broadcast %185 : vector<8x1xf32> to vector<8x16xf32>
    %187 = arith.subf %183, %186 : vector<8x16xf32>
    %188 = math.exp %187 : vector<8x16xf32>
    %cst_42 = arith.constant dense<0.000000e+00> : vector<8xf32>
    %189 = vector.multi_reduction <add>, %188, %cst_42 [1] : vector<8x16xf32> to vector<8xf32>
    %190 = vector.shape_cast %189 : vector<8xf32> to vector<8x1xf32>
    %191 = vector.broadcast %190 : vector<8x1xf32> to vector<8x16xf32>
    %192 = arith.divf %188, %191 : vector<8x16xf32>
    %193 = arith.addf %163, %192 : vector<8x16xf32>
    %c0_43 = arith.constant 0 : index
    %c0_44 = arith.constant 0 : index
    %194 = vector.load %arg2[%c0_43, %c0_44] : memref<32x32xf32, #tpu.memory_space<vmem>>, vector<32x32xf32>
    %cst_45 = arith.constant dense<0.000000e+00> : vector<32x16xf32>
    %195 = tpu.matmul %194, %3, %cst_45 {dimension_numbers = #tpu.dot_dimension_numbers<[1], [0], [0], [1], [0, 0, 1, 1], [], []>} : vector<32x32xf32>, vector<32x16xf32>, vector<32x16xf32> -> vector<32x16xf32>
    %196 = vector.broadcast %4 : vector<1x16xf32> to vector<32x16xf32>
    %197 = arith.addf %195, %196 : vector<32x16xf32>
    %cst_46 = arith.constant dense<0xFF800000> : vector<32xf32>
    %198 = vector.multi_reduction <maximumf>, %197, %cst_46 [1] : vector<32x16xf32> to vector<32xf32>
    %199 = vector.shape_cast %198 : vector<32xf32> to vector<32x1xf32>
    %200 = vector.broadcast %199 : vector<32x1xf32> to vector<32x16xf32>
    %201 = arith.subf %197, %200 : vector<32x16xf32>
    %202 = math.exp %201 : vector<32x16xf32>
    %cst_47 = arith.constant dense<0.000000e+00> : vector<32xf32>
    %203 = vector.multi_reduction <add>, %202, %cst_47 [1] : vector<32x16xf32> to vector<32xf32>
    %204 = vector.shape_cast %203 : vector<32xf32> to vector<32x1xf32>
    %205 = vector.broadcast %204 : vector<32x1xf32> to vector<32x16xf32>
    %206 = arith.divf %202, %205 : vector<32x16xf32>
    %207 = vector.extract_strided_slice %206 {offsets = [0, 0], sizes = [8, 16], strides = [1, 1]} : vector<32x16xf32> to vector<8x16xf32>
    %208 = arith.addf %193, %207 : vector<8x16xf32>
    %209 = vector.extract_strided_slice %206 {offsets = [8, 0], sizes = [8, 16], strides = [1, 1]} : vector<32x16xf32> to vector<8x16xf32>
    %210 = arith.addf %208, %209 : vector<8x16xf32>
    %211 = vector.extract_strided_slice %206 {offsets = [16, 0], sizes = [8, 16], strides = [1, 1]} : vector<32x16xf32> to vector<8x16xf32>
    %212 = arith.addf %210, %211 : vector<8x16xf32>
    %213 = vector.extract_strided_slice %206 {offsets = [24, 0], sizes = [8, 16], strides = [1, 1]} : vector<32x16xf32> to vector<8x16xf32>
    %214 = arith.addf %212, %213 : vector<8x16xf32>
    %cst_48 = arith.constant 1.000000e-01 : f32
    %215 = vector.broadcast %cst_48 : f32 to vector<8x16xf32>
    %216 = arith.mulf %214, %215 : vector<8x16xf32>
    %c0_49 = arith.constant 0 : index
    %c0_50 = arith.constant 0 : index
    %217 = vector.load %arg6[%c0_49, %c0_50] : memref<8x16xf32, #tpu.memory_space<vmem>>, vector<8x16xf32>
    tpu.vector_store %arg6[%c0_49, %c0_50], %216 {strides = array<i32>} : memref<8x16xf32, #tpu.memory_space<vmem>>, vector<8x16xf32>,
    return
  }
  func.func @transform_0(%arg0: i32) -> (i32, i32) {
    %c0_i32 = arith.constant 0 : i32
    %c0_i32_0 = arith.constant 0 : i32
    %c0_i32_1 = arith.constant 0 : i32
    return %c0_i32, %c0_i32_0 : i32, i32
  }
  func.func @transform_1(%arg0: i32) -> (i32, i32) {
    %c0_i32 = arith.constant 0 : i32
    %c0_i32_0 = arith.constant 0 : i32
    %c0_i32_1 = arith.constant 0 : i32
    return %c0_i32, %c0_i32_0 : i32, i32
  }
  func.func @transform_2(%arg0: i32) -> (i32, i32) {
    %c0_i32 = arith.constant 0 : i32
    %c0_i32_0 = arith.constant 0 : i32
    %c0_i32_1 = arith.constant 0 : i32
    return %c0_i32, %c0_i32_0 : i32, i32
  }
  func.func @transform_3(%arg0: i32) -> (i32, i32) {
    %c0_i32 = arith.constant 0 : i32
    %c0_i32_0 = arith.constant 0 : i32
    %c0_i32_1 = arith.constant 0 : i32
    return %c0_i32, %c0_i32_0 : i32, i32
  }
  func.func @transform_4(%arg0: i32) -> (i32, i32) {
    %c0_i32 = arith.constant 0 : i32
    %c0_i32_0 = arith.constant 0 : i32
    %c0_i32_1 = arith.constant 0 : i32
    return %c0_i32, %c0_i32_0 : i32, i32
  }
  func.func @transform_5(%arg0: i32) -> (i32, i32) {
    %c0_i32 = arith.constant 0 : i32
    %c0_i32_0 = arith.constant 0 : i32
    %c0_i32_1 = arith.constant 0 : i32
    return %c0_i32, %c0_i32_0 : i32, i32
  }
}

</mosaic_0001>

<llo_original>
// kernel: lstm_encoding_history_forward.1
$region0: #{lstm_encoding_history_forward.1}
  #allocation0 [shape = 'u32[]', space=smem, size = 0x4, offset = 0x4, fixed_abs, tag = 'smem constant byte address 0x4 - core index']
  #allocation1 [shape = 'u32[144,128]{1,0:T(1,128)}', space=vmem, size = 0x12000, scoped, tag = 'internal scratch']
  %s0 = inlined_call_operand.vmem [shape: f32[48,8], index: 0, kind: input, shape index: {}]
  %s1 = inlined_call_operand.vmem [shape: f32[32,32], index: 1, kind: input, shape index: {}]
  %s2 = inlined_call_operand.vmem [shape: f32[16,32], index: 2, kind: input, shape index: {}]
  %s3 = inlined_call_operand.vmem [shape: f32[41,128], index: 3, kind: input, shape index: {}]
  %s4 = inlined_call_operand.vmem [shape: f32[33,16], index: 4, kind: input, shape index: {}]
  %s5 = inlined_call_operand.vmem [shape: f32[8,16], index: 5, kind: output, shape index: {}]
  %s6 = sld [smem:[#allocation0]]
  $region30: #{lstm_encoding_history_forward.1} parent=0
    _
  %s8 = ssub.s32 1, %s6
  %s9 = scalar_select 0, %s8, %s6
  // Predicated region
  $region2: #{lstm_encoding_history_forward.1} parent=0 // pred_check
    _
  $region3: #{lstm_encoding_history_forward.1} parent=0 // pred_check_branch
    %11 = sbr.rel (0) target = $region5
  $region4: #{lstm_encoding_history_forward.1} parent=0 // pred_region
    _
  $region5: #{lstm_encoding_history_forward.1} parent=0 // pred_fallthru
    _
  // Predicated region
  $region6: #{lstm_encoding_history_forward.1} parent=0 // pred_check
    _
  $region7: #{lstm_encoding_history_forward.1} parent=0 // pred_check_branch
    %13 = sbr.rel (0) target = $region9
  $region8: #{lstm_encoding_history_forward.1} parent=0 // pred_region
    _
  $region9: #{lstm_encoding_history_forward.1} parent=0 // pred_fallthru
    _
  // Predicated region
  $region10: #{lstm_encoding_history_forward.1} parent=0 // pred_check
    _
  $region11: #{lstm_encoding_history_forward.1} parent=0 // pred_check_branch
    %15 = sbr.rel (0) target = $region13
  $region12: #{lstm_encoding_history_forward.1} parent=0 // pred_region
    _
  $region13: #{lstm_encoding_history_forward.1} parent=0 // pred_fallthru
    _
  // Predicated region
  $region14: #{lstm_encoding_history_forward.1} parent=0 // pred_check
    _
  $region15: #{lstm_encoding_history_forward.1} parent=0 // pred_check_branch
    %17 = sbr.rel (0) target = $region17
  $region16: #{lstm_encoding_history_forward.1} parent=0 // pred_region
    _
  $region17: #{lstm_encoding_history_forward.1} parent=0 // pred_fallthru
    _
  // Predicated region
  $region18: #{lstm_encoding_history_forward.1} parent=0 // pred_check
    _
  $region19: #{lstm_encoding_history_forward.1} parent=0 // pred_check_branch
    %19 = sbr.rel (0) target = $region21
  $region20: #{lstm_encoding_history_forward.1} parent=0 // pred_region
    _
  $region21: #{lstm_encoding_history_forward.1} parent=0 // pred_fallthru
    _
  %v20 = vld [vmem:[%s3] sm:$0xff]
  %v21 = vld [vmem:[%s3 + $0x8] sm:$0xff]
  %v22 = vld [vmem:[%s3 + $0x10] sm:$0xff]
  %v23 = vld [vmem:[%s3 + $0x18] sm:$0xff]
  %v24 = vld [vmem:[%s3 + $0x20] sm:$0xff]
  %v25 = vld [vmem:[%s3 + $0x28] sm:$0x1]
  %v26 = vld [vmem:[%s4] sm:$0xff]
  %v27 = vld [vmem:[%s4 + $0x8] sm:$0xff]
  %v28 = vld [vmem:[%s4 + $0x10] sm:$0xff]
  %v29 = vld [vmem:[%s4 + $0x18] sm:$0xff]
  %v30 = vld [vmem:[%s4 + $0x20] sm:$0x1]
  %v31 = vlaneseq
  %v32 = vshrl.u32 %v31, 7
  %v33 = vsub.s32 0, %v32
  %v34 = vrot.slane %v30, %v33
  %v35 = vld [vmem:[%s2] sm:$0xff]
  %v36 = vld [vmem:[%s2 + $0x8] sm:$0xff]
  %v37 = vld [vmem:[%s0] sm:$0xff]
  %v38 = vld [vmem:[%s0 + $0x8] sm:$0xff]
  %v39 = vld [vmem:[%s0 + $0x10] sm:$0xff]
  %v40 = vld [vmem:[%s0 + $0x18] sm:$0xff]
  %v41 = vld [vmem:[%s0 + $0x20] sm:$0xff]
  %v42 = vld [vmem:[%s0 + $0x28] sm:$0xff]
  %v43 = vlaneseq
  %v44 = vshrl.u32 %v43, 7
  %v45 = vsub.s32 0, %v44
  %v46 = vrot.slane %v25, %v45
  %vm47 = vcmask 64512
  %v49 = vsel %vm47, %v37, 0
  %v52 = vsel %vm47, %v38, 0
  %v55 = vsel %vm47, %v39, 0
  %v58 = vsel %vm47, %v40, 0
  %v61 = vsel %vm47, %v41, 0
  %v64 = vsel %vm47, %v42, 0
  %66 = vmatprep.subr.mxu0 0.0
  %67 = vmatpush1.msra.mxu0 0.0
  %68 = vmatprep.subr.mxu0 0.0
  %69 = vmatpush1.msra.mxu0 0.0
  %70 = vmatprep.subr.mxu0 0.0
  %71 = vmatpush1.msra.mxu0 0.0
  %72 = vmatprep.subr.mxu0 0.0
  %73 = vmatpush1.msra.mxu0 0.0
  %74 = vmatprep.subr.mxu0 0.0
  %75 = vmatpush1.msra.mxu0 0.0
  %76 = vmatprep.subr.mxu0 0.0
  %77 = vmatpush1.msra.mxu0 0.0
  %78 = vmatprep.subr.mxu0 0.0
  %79 = vmatpush1.msra.mxu0 0.0
  %80 = vmatprep.subr.mxu0 0.0
  %81 = vmatpush1.msra.mxu0 0.0
  %82 = vmatprep.subr.mxu0 0.0
  %83 = vmatpush1.msra.mxu0 0.0
  %84 = vmatprep.subr.mxu0 0.0
  %85 = vmatpush1.msra.mxu0 0.0
  %86 = vmatprep.subr.mxu0 0.0
  %87 = vmatpush1.msra.mxu0 0.0
  %88 = vmatprep.subr.mxu0 0.0
  %89 = vmatpush1.msra.mxu0 0.0
  %90 = vmatprep.subr.mxu0 0.0
  %91 = vmatpush1.msra.mxu0 0.0
  %92 = vmatprep.subr.mxu0 0.0
  %93 = vmatpush1.msra.mxu0 0.0
  %94 = vmatprep.subr.mxu0 0.0
  %95 = vmatpush1.msra.mxu0 0.0
  %96 = vmatprep.subr.mxu0 0.0
  %97 = vmatpush1.msra.mxu0 %v20
  %98 = vmatprep.subr.mxu0 0.0
  %99 = vmatpush2.msra.mxu0 0.0
  %100 = vmatprep.subr.mxu0 0.0
  %101 = vmatpush2.msra.mxu0 0.0
  %102 = vmatprep.subr.mxu0 0.0
  %103 = vmatpush2.msra.mxu0 0.0
  %104 = vmatprep.subr.mxu0 0.0
  %105 = vmatpush2.msra.mxu0 0.0
  %106 = vmatprep.subr.mxu0 0.0
  %107 = vmatpush2.msra.mxu0 0.0
  %108 = vmatprep.subr.mxu0 0.0
  %109 = vmatpush2.msra.mxu0 0.0
  %110 = vmatprep.subr.mxu0 0.0
  %111 = vmatpush2.msra.mxu0 0.0
  %112 = vmatprep.subr.mxu0 0.0
  %113 = vmatpush2.msra.mxu0 0.0
  %114 = vmatprep.subr.mxu0 0.0
  %115 = vmatpush2.msra.mxu0 0.0
  %116 = vmatprep.subr.mxu0 0.0
  %117 = vmatpush2.msra.mxu0 0.0
  %118 = vmatprep.subr.mxu0 0.0
  %119 = vmatpush2.msra.mxu0 0.0
  %120 = vmatprep.subr.mxu0 0.0
  %121 = vmatpush2.msra.mxu0 0.0
  %122 = vmatprep.subr.mxu0 0.0
  %123 = vmatpush2.msra.mxu0 0.0
  %124 = vmatprep.subr.mxu0 0.0
  %125 = vmatpush2.msra.mxu0 0.0
  %126 = vmatprep.subr.mxu0 0.0
  %127 = vmatpush2.msra.mxu0 0.0
  %128 = vmatprep.subr.mxu0 0.0
  %129 = vmatpush2.msra.mxu0 0.0
  %130 = vmatprep.mubr.f32.mxu0 0.0
  %131 = vmatmul.mubr.f32.gmra.mxu0 %v49
  %v132 = vpop.f32.mrf.mxu0
  %v133 = vadd.f32 %v46, %v132
  %v134 = vpop.f32.mrf.mxu0
  %135 = vmatprep.mubr.f32.mxu0 0.0
  %136 = vmatmul.mubr.f32.gmra.mxu0 %v52
  %v137 = vpop.f32.mrf.mxu0
  %v138 = vadd.f32 %v46, %v137
  %v139 = vpop.f32.mrf.mxu0
  %140 = vmatprep.mubr.f32.mxu0 0.0
  %141 = vmatmul.mubr.f32.gmra.mxu0 %v55
  %v142 = vpop.f32.mrf.mxu0
  %v143 = vadd.f32 %v46, %v142
  %v144 = vpop.f32.mrf.mxu0
  %145 = vmatprep.mubr.f32.mxu0 0.0
  %146 = vmatmul.mubr.f32.gmra.mxu0 %v58
  %v147 = vpop.f32.mrf.mxu0
  %v148 = vadd.f32 %v46, %v147
  %v149 = vpop.f32.mrf.mxu0
  %150 = vmatprep.mubr.f32.mxu0 0.0
  %151 = vmatmul.mubr.f32.gmra.mxu0 %v61
  %v152 = vpop.f32.mrf.mxu0
  %v153 = vadd.f32 %v46, %v152
  %v154 = vpop.f32.mrf.mxu0
  %155 = vmatprep.mubr.f32.mxu0 0.0
  %156 = vmatmul.mubr.f32.gmra.mxu0 %v64
  %v157 = vpop.f32.mrf.mxu0
  %v158 = vadd.f32 %v46, %v157
  %v159 = vpop.f32.mrf.mxu0
  %160 = vdwg.mxu0
  %vm161 = vcmask 261120
  %v163 = vsel %vm161, %v35, 0
  %165 = vmatprep.subr.mxu0 0.0
  %166 = vmatpush1.msra.mxu0 0.0
  %167 = vmatprep.subr.mxu0 0.0
  %168 = vmatpush1.msra.mxu0 0.0
  %169 = vmatprep.subr.mxu0 0.0
  %170 = vmatpush1.msra.mxu0 0.0
  %171 = vmatprep.subr.mxu0 0.0
  %172 = vmatpush1.msra.mxu0 0.0
  %173 = vmatprep.subr.mxu0 0.0
  %174 = vmatpush1.msra.mxu0 0.0
  %175 = vmatprep.subr.mxu0 0.0
  %176 = vmatpush1.msra.mxu0 0.0
  %177 = vmatprep.subr.mxu0 0.0
  %178 = vmatpush1.msra.mxu0 0.0
  %179 = vmatprep.subr.mxu0 0.0
  %180 = vmatpush1.msra.mxu0 0.0
  %181 = vmatprep.subr.mxu0 0.0
  %182 = vmatpush1.msra.mxu0 0.0
  %183 = vmatprep.subr.mxu0 0.0
  %184 = vmatpush1.msra.mxu0 0.0
  %185 = vmatprep.subr.mxu0 0.0
  %186 = vmatpush1.msra.mxu0 0.0
  %187 = vmatprep.subr.mxu0 0.0
  %188 = vmatpush1.msra.mxu0 0.0
  %189 = vmatprep.subr.mxu0 0.0
  %190 = vmatpush1.msra.mxu0 %v24
  %191 = vmatprep.subr.mxu0 0.0
  %192 = vmatpush1.msra.mxu0 %v23
  %193 = vmatprep.subr.mxu0 0.0
  %194 = vmatpush1.msra.mxu0 %v22
  %195 = vmatprep.subr.mxu0 0.0
  %196 = vmatpush1.msra.mxu0 %v21
  %197 = vmatprep.subr.mxu0 0.0
  %198 = vmatpush2.msra.mxu0 0.0
  %199 = vmatprep.subr.mxu0 0.0
  %200 = vmatpush2.msra.mxu0 0.0
  %201 = vmatprep.subr.mxu0 0.0
  %202 = vmatpush2.msra.mxu0 0.0
  %203 = vmatprep.subr.mxu0 0.0
  %204 = vmatpush2.msra.mxu0 0.0
  %205 = vmatprep.subr.mxu0 0.0
  %206 = vmatpush2.msra.mxu0 0.0
  %207 = vmatprep.subr.mxu0 0.0
  %208 = vmatpush2.msra.mxu0 0.0
  %209 = vmatprep.subr.mxu0 0.0
  %210 = vmatpush2.msra.mxu0 0.0
  %211 = vmatprep.subr.mxu0 0.0
  %212 = vmatpush2.msra.mxu0 0.0
  %213 = vmatprep.subr.mxu0 0.0
  %214 = vmatpush2.msra.mxu0 0.0
  %215 = vmatprep.subr.mxu0 0.0
  %216 = vmatpush2.msra.mxu0 0.0
  %217 = vmatprep.subr.mxu0 0.0
  %218 = vmatpush2.msra.mxu0 0.0
  %219 = vmatprep.subr.mxu0 0.0
  %220 = vmatpush2.msra.mxu0 0.0
  %221 = vmatprep.subr.mxu0 0.0
  %222 = vmatpush2.msra.mxu0 0.0
  %223 = vmatprep.subr.mxu0 0.0
  %224 = vmatpush2.msra.mxu0 0.0
  %225 = vmatprep.subr.mxu0 0.0
  %226 = vmatpush2.msra.mxu0 0.0
  %227 = vmatprep.subr.mxu0 0.0
  %228 = vmatpush2.msra.mxu0 0.0
  %229 = vmatprep.mubr.f32.mxu0 0.0
  %230 = vmatmul.mubr.f32.gmra.mxu0 %v163
  %v231 = vpop.f32.mrf.mxu0
  %v232 = vadd.f32 0.0, %v231
  %v233 = vpop.f32.mrf.mxu0
  %234 = vdwg.mxu0
  %v235 = vadd.f32 %v133, %v232
  %v236 = vxor.u32 %v235, 2147483648
  %v237 = vmul.f32 %v236, 1.442695
  %v238 = vpow.pop %v237
  %v239 = vadd.f32 %v238, 1.0
  %v240 = vrcp.pop %v239
  %v241 = vmul.f32 1.0, %v240
  %v242 = vtanh.pop %v235
  %244 = vrot.lane.b32.xlu0 %v36, 32
  %v245 = vpop.permute.xlu0 %244
  %v247 = vmul.f32 %v241, %v245
  %249 = vrot.lane.b32.xlu0 %v242, 64
  %v250 = vpop.permute.xlu0 %249
  %v252 = vmul.f32 %v241, %v250
  %254 = vrot.lane.b32.xlu0 %v252, 32
  %v255 = vpop.permute.xlu0 %254
  %v257 = vadd.f32 %v247, %v255
  %v258 = vtanh.pop %v257
  %260 = vrot.lane.b32.xlu0 %v258, 64
  %v261 = vpop.permute.xlu0 %260
  %v263 = vmul.f32 %v241, %v261
  %265 = vrot.lane.b32.xlu0 %v263, 32
  %v266 = vpop.permute.xlu0 %265
  %v267 = vsel %vm161, %v266, 0
  %269 = vmatprep.subr.mxu0 0.0
  %270 = vmatpush1.msra.mxu0 0.0
  %271 = vmatprep.subr.mxu0 0.0
  %272 = vmatpush1.msra.mxu0 0.0
  %273 = vmatprep.subr.mxu0 0.0
  %274 = vmatpush1.msra.mxu0 0.0
  %275 = vmatprep.subr.mxu0 0.0
  %276 = vmatpush1.msra.mxu0 0.0
  %277 = vmatprep.subr.mxu0 0.0
  %278 = vmatpush1.msra.mxu0 0.0
  %279 = vmatprep.subr.mxu0 0.0
  %280 = vmatpush1.msra.mxu0 0.0
  %281 = vmatprep.subr.mxu0 0.0
  %282 = vmatpush1.msra.mxu0 0.0
  %283 = vmatprep.subr.mxu0 0.0
  %284 = vmatpush1.msra.mxu0 0.0
  %285 = vmatprep.subr.mxu0 0.0
  %286 = vmatpush1.msra.mxu0 0.0
  %287 = vmatprep.subr.mxu0 0.0
  %288 = vmatpush1.msra.mxu0 0.0
  %289 = vmatprep.subr.mxu0 0.0
  %290 = vmatpush1.msra.mxu0 0.0
  %291 = vmatprep.subr.mxu0 0.0
  %292 = vmatpush1.msra.mxu0 0.0
  %293 = vmatprep.subr.mxu0 0.0
  %294 = vmatpush1.msra.mxu0 %v29
  %295 = vmatprep.subr.mxu0 0.0
  %296 = vmatpush1.msra.mxu0 %v28
  %297 = vmatprep.subr.mxu0 0.0
  %298 = vmatpush1.msra.mxu0 %v27
  %299 = vmatprep.subr.mxu0 0.0
  %300 = vmatpush1.msra.mxu0 %v26
  %301 = vmatprep.subr.mxu0 0.0
  %302 = vmatpush2.msra.mxu0 0.0
  %303 = vmatprep.subr.mxu0 0.0
  %304 = vmatpush2.msra.mxu0 0.0
  %305 = vmatprep.subr.mxu0 0.0
  %306 = vmatpush2.msra.mxu0 0.0
  %307 = vmatprep.subr.mxu0 0.0
  %308 = vmatpush2.msra.mxu0 0.0
  %309 = vmatprep.subr.mxu0 0.0
  %310 = vmatpush2.msra.mxu0 0.0
  %311 = vmatprep.subr.mxu0 0.0
  %312 = vmatpush2.msra.mxu0 0.0
  %313 = vmatprep.subr.mxu0 0.0
  %314 = vmatpush2.msra.mxu0 0.0
  %315 = vmatprep.subr.mxu0 0.0
  %316 = vmatpush2.msra.mxu0 0.0
  %317 = vmatprep.subr.mxu0 0.0
  %318 = vmatpush2.msra.mxu0 0.0
  %319 = vmatprep.subr.mxu0 0.0
  %320 = vmatpush2.msra.mxu0 0.0
  %321 = vmatprep.subr.mxu0 0.0
  %322 = vmatpush2.msra.mxu0 0.0
  %323 = vmatprep.subr.mxu0 0.0
  %324 = vmatpush2.msra.mxu0 0.0
  %325 = vmatprep.subr.mxu0 0.0
  %326 = vmatpush2.msra.mxu0 0.0
  %327 = vmatprep.subr.mxu0 0.0
  %328 = vmatpush2.msra.mxu0 0.0
  %329 = vmatprep.subr.mxu0 0.0
  %330 = vmatpush2.msra.mxu0 0.0
  %331 = vmatprep.subr.mxu0 0.0
  %332 = vmatpush2.msra.mxu0 0.0
  %333 = vmatprep.mubr.f32.mxu0 0.0
  %334 = vmatmul.mubr.f32.gmra.mxu0 %v267
  %v335 = vpop.f32.mrf.mxu0
  %v336 = vadd.f32 %v34, %v335
  %v337 = vpop.f32.mrf.mxu0
  %338 = vdwg.mxu0
  %vm339 = vcmask 130048
  %v340 = vsel %vm339, %v336, -inf
  %341 = vmax.xlane.f32.xlu0 %v340
  %v342 = vpop.xlane.xlu0 %341
  %v343 = vsub.f32 %v336, %v342
  %v344 = vmul.f32 %v343, 1.442695
  %v345 = vpow.pop %v344
  %v346 = vsel %vm339, %v345, 0.0
  %347 = vadd.xlane.f32.xlu0 %v346
  %v348 = vpop.xlane.xlu0 %347
  %v349 = vrcp.pop %v348
  %v350 = vmul.f32 %v345, %v349
  %v351 = vadd.f32 %v350, 0.0
  %352 = vmatprep.subr.mxu0 0.0
  %353 = vmatpush1.msra.mxu0 0.0
  %354 = vmatprep.subr.mxu0 0.0
  %355 = vmatpush1.msra.mxu0 0.0
  %356 = vmatprep.subr.mxu0 0.0
  %357 = vmatpush1.msra.mxu0 0.0
  %358 = vmatprep.subr.mxu0 0.0
  %359 = vmatpush1.msra.mxu0 0.0
  %360 = vmatprep.subr.mxu0 0.0
  %361 = vmatpush1.msra.mxu0 0.0
  %362 = vmatprep.subr.mxu0 0.0
  %363 = vmatpush1.msra.mxu0 0.0
  %364 = vmatprep.subr.mxu0 0.0
  %365 = vmatpush1.msra.mxu0 0.0
  %366 = vmatprep.subr.mxu0 0.0
  %367 = vmatpush1.msra.mxu0 0.0
  %368 = vmatprep.subr.mxu0 0.0
  %369 = vmatpush1.msra.mxu0 0.0
  %370 = vmatprep.subr.mxu0 0.0
  %371 = vmatpush1.msra.mxu0 0.0
  %372 = vmatprep.subr.mxu0 0.0
  %373 = vmatpush1.msra.mxu0 0.0
  %374 = vmatprep.subr.mxu0 0.0
  %375 = vmatpush1.msra.mxu0 0.0
  %376 = vmatprep.subr.mxu0 0.0
  %377 = vmatpush1.msra.mxu0 %v24
  %378 = vmatprep.subr.mxu0 0.0
  %379 = vmatpush1.msra.mxu0 %v23
  %380 = vmatprep.subr.mxu0 0.0
  %381 = vmatpush1.msra.mxu0 %v22
  %382 = vmatprep.subr.mxu0 0.0
  %383 = vmatpush1.msra.mxu0 %v21
  %384 = vmatprep.subr.mxu0 0.0
  %385 = vmatpush2.msra.mxu0 0.0
  %386 = vmatprep.subr.mxu0 0.0
  %387 = vmatpush2.msra.mxu0 0.0
  %388 = vmatprep.subr.mxu0 0.0
  %389 = vmatpush2.msra.mxu0 0.0
  %390 = vmatprep.subr.mxu0 0.0
  %391 = vmatpush2.msra.mxu0 0.0
  %392 = vmatprep.subr.mxu0 0.0
  %393 = vmatpush2.msra.mxu0 0.0
  %394 = vmatprep.subr.mxu0 0.0
  %395 = vmatpush2.msra.mxu0 0.0
  %396 = vmatprep.subr.mxu0 0.0
  %397 = vmatpush2.msra.mxu0 0.0
  %398 = vmatprep.subr.mxu0 0.0
  %399 = vmatpush2.msra.mxu0 0.0
  %400 = vmatprep.subr.mxu0 0.0
  %401 = vmatpush2.msra.mxu0 0.0
  %402 = vmatprep.subr.mxu0 0.0
  %403 = vmatpush2.msra.mxu0 0.0
  %404 = vmatprep.subr.mxu0 0.0
  %405 = vmatpush2.msra.mxu0 0.0
  %406 = vmatprep.subr.mxu0 0.0
  %407 = vmatpush2.msra.mxu0 0.0
  %408 = vmatprep.subr.mxu0 0.0
  %409 = vmatpush2.msra.mxu0 0.0
  %410 = vmatprep.subr.mxu0 0.0
  %411 = vmatpush2.msra.mxu0 0.0
  %412 = vmatprep.subr.mxu0 0.0
  %413 = vmatpush2.msra.mxu0 0.0
  %414 = vmatprep.subr.mxu0 0.0
  %415 = vmatpush2.msra.mxu0 0.0
  %416 = vmatprep.mubr.f32.mxu0 0.0
  %417 = vmatmul.mubr.f32.gmra.mxu0 %v267
  %v418 = vpop.f32.mrf.mxu0
  %v419 = vadd.f32 0.0, %v418
  %v420 = vpop.f32.mrf.mxu0
  %421 = vdwg.mxu0
  %v422 = vadd.f32 %v138, %v419
  %v423 = vxor.u32 %v422, 2147483648
  %v424 = vmul.f32 %v423, 1.442695
  %v425 = vpow.pop %v424
  %v426 = vadd.f32 %v425, 1.0
  %v427 = vrcp.pop %v426
  %v428 = vmul.f32 1.0, %v427
  %v429 = vtanh.pop %v422
  %v430 = vmul.f32 %v428, %v257
  %432 = vrot.lane.b32.xlu0 %v429, 64
  %v433 = vpop.permute.xlu0 %432
  %v435 = vmul.f32 %v428, %v433
  %437 = vrot.lane.b32.xlu0 %v435, 32
  %v438 = vpop.permute.xlu0 %437
  %v440 = vadd.f32 %v430, %v438
  %v441 = vtanh.pop %v440
  %443 = vrot.lane.b32.xlu0 %v441, 64
  %v444 = vpop.permute.xlu0 %443
  %v446 = vmul.f32 %v428, %v444
  %448 = vrot.lane.b32.xlu0 %v446, 32
  %v449 = vpop.permute.xlu0 %448
  %v450 = vsel %vm161, %v449, 0
  %452 = vmatprep.subr.mxu0 0.0
  %453 = vmatpush1.msra.mxu0 0.0
  %454 = vmatprep.subr.mxu0 0.0
  %455 = vmatpush1.msra.mxu0 0.0
  %456 = vmatprep.subr.mxu0 0.0
  %457 = vmatpush1.msra.mxu0 0.0
  %458 = vmatprep.subr.mxu0 0.0
  %459 = vmatpush1.msra.mxu0 0.0
  %460 = vmatprep.subr.mxu0 0.0
  %461 = vmatpush1.msra.mxu0 0.0
  %462 = vmatprep.subr.mxu0 0.0
  %463 = vmatpush1.msra.mxu0 0.0
  %464 = vmatprep.subr.mxu0 0.0
  %465 = vmatpush1.msra.mxu0 0.0
  %466 = vmatprep.subr.mxu0 0.0
  %467 = vmatpush1.msra.mxu0 0.0
  %468 = vmatprep.subr.mxu0 0.0
  %469 = vmatpush1.msra.mxu0 0.0
  %470 = vmatprep.subr.mxu0 0.0
  %471 = vmatpush1.msra.mxu0 0.0
  %472 = vmatprep.subr.mxu0 0.0
  %473 = vmatpush1.msra.mxu0 0.0
  %474 = vmatprep.subr.mxu0 0.0
  %475 = vmatpush1.msra.mxu0 0.0
  %476 = vmatprep.subr.mxu0 0.0
  %477 = vmatpush1.msra.mxu0 %v29
  %478 = vmatprep.subr.mxu0 0.0
  %479 = vmatpush1.msra.mxu0 %v28
  %480 = vmatprep.subr.mxu0 0.0
  %481 = vmatpush1.msra.mxu0 %v27
  %482 = vmatprep.subr.mxu0 0.0
  %483 = vmatpush1.msra.mxu0 %v26
  %484 = vmatprep.subr.mxu0 0.0
  %485 = vmatpush2.msra.mxu0 0.0
  %486 = vmatprep.subr.mxu0 0.0
  %487 = vmatpush2.msra.mxu0 0.0
  %488 = vmatprep.subr.mxu0 0.0
  %489 = vmatpush2.msra.mxu0 0.0
  %490 = vmatprep.subr.mxu0 0.0
  %491 = vmatpush2.msra.mxu0 0.0
  %492 = vmatprep.subr.mxu0 0.0
  %493 = vmatpush2.msra.mxu0 0.0
  %494 = vmatprep.subr.mxu0 0.0
  %495 = vmatpush2.msra.mxu0 0.0
  %496 = vmatprep.subr.mxu0 0.0
  %497 = vmatpush2.msra.mxu0 0.0
  %498 = vmatprep.subr.mxu0 0.0
  %499 = vmatpush2.msra.mxu0 0.0
  %500 = vmatprep.subr.mxu0 0.0
  %501 = vmatpush2.msra.mxu0 0.0
  %502 = vmatprep.subr.mxu0 0.0
  %503 = vmatpush2.msra.mxu0 0.0
  %504 = vmatprep.subr.mxu0 0.0
  %505 = vmatpush2.msra.mxu0 0.0
  %506 = vmatprep.subr.mxu0 0.0
  %507 = vmatpush2.msra.mxu0 0.0
  %508 = vmatprep.subr.mxu0 0.0
  %509 = vmatpush2.msra.mxu0 0.0
  %510 = vmatprep.subr.mxu0 0.0
  %511 = vmatpush2.msra.mxu0 0.0
  %512 = vmatprep.subr.mxu0 0.0
  %513 = vmatpush2.msra.mxu0 0.0
  %514 = vmatprep.subr.mxu0 0.0
  %515 = vmatpush2.msra.mxu0 0.0
  %516 = vmatprep.mubr.f32.mxu0 0.0
  %517 = vmatmul.mubr.f32.gmra.mxu0 %v450
  %v518 = vpop.f32.mrf.mxu0
  %v519 = vadd.f32 %v34, %v518
  %v520 = vpop.f32.mrf.mxu0
  %521 = vdwg.mxu0
  %v522 = vsel %vm339, %v519, -inf
  %523 = vmax.xlane.f32.xlu0 %v522
  %v524 = vpop.xlane.xlu0 %523
  %v525 = vsub.f32 %v519, %v524
  %v526 = vmul.f32 %v525, 1.442695
  %v527 = vpow.pop %v526
  %v528 = vsel %vm339, %v527, 0.0
  %529 = vadd.xlane.f32.xlu0 %v528
  %v530 = vpop.xlane.xlu0 %529
  %v531 = vrcp.pop %v530
  %v532 = vmul.f32 %v527, %v531
  %v533 = vadd.f32 %v351, %v532
  %534 = vmatprep.subr.mxu0 0.0
  %535 = vmatpush1.msra.mxu0 0.0
  %536 = vmatprep.subr.mxu0 0.0
  %537 = vmatpush1.msra.mxu0 0.0
  %538 = vmatprep.subr.mxu0 0.0
  %539 = vmatpush1.msra.mxu0 0.0
  %540 = vmatprep.subr.mxu0 0.0
  %541 = vmatpush1.msra.mxu0 0.0
  %542 = vmatprep.subr.mxu0 0.0
  %543 = vmatpush1.msra.mxu0 0.0
  %544 = vmatprep.subr.mxu0 0.0
  %545 = vmatpush1.msra.mxu0 0.0
  %546 = vmatprep.subr.mxu0 0.0
  %547 = vmatpush1.msra.mxu0 0.0
  %548 = vmatprep.subr.mxu0 0.0
  %549 = vmatpush1.msra.mxu0 0.0
  %550 = vmatprep.subr.mxu0 0.0
  %551 = vmatpush1.msra.mxu0 0.0
  %552 = vmatprep.subr.mxu0 0.0
  %553 = vmatpush1.msra.mxu0 0.0
  %554 = vmatprep.subr.mxu0 0.0
  %555 = vmatpush1.msra.mxu0 0.0
  %556 = vmatprep.subr.mxu0 0.0
  %557 = vmatpush1.msra.mxu0 0.0
  %558 = vmatprep.subr.mxu0 0.0
  %559 = vmatpush1.msra.mxu0 %v24
  %560 = vmatprep.subr.mxu0 0.0
  %561 = vmatpush1.msra.mxu0 %v23
  %562 = vmatprep.subr.mxu0 0.0
  %563 = vmatpush1.msra.mxu0 %v22
  %564 = vmatprep.subr.mxu0 0.0
  %565 = vmatpush1.msra.mxu0 %v21
  %566 = vmatprep.subr.mxu0 0.0
  %567 = vmatpush2.msra.mxu0 0.0
  %568 = vmatprep.subr.mxu0 0.0
  %569 = vmatpush2.msra.mxu0 0.0
  %570 = vmatprep.subr.mxu0 0.0
  %571 = vmatpush2.msra.mxu0 0.0
  %572 = vmatprep.subr.mxu0 0.0
  %573 = vmatpush2.msra.mxu0 0.0
  %574 = vmatprep.subr.mxu0 0.0
  %575 = vmatpush2.msra.mxu0 0.0
  %576 = vmatprep.subr.mxu0 0.0
  %577 = vmatpush2.msra.mxu0 0.0
  %578 = vmatprep.subr.mxu0 0.0
  %579 = vmatpush2.msra.mxu0 0.0
  %580 = vmatprep.subr.mxu0 0.0
  %581 = vmatpush2.msra.mxu0 0.0
  %582 = vmatprep.subr.mxu0 0.0
  %583 = vmatpush2.msra.mxu0 0.0
  %584 = vmatprep.subr.mxu0 0.0
  %585 = vmatpush2.msra.mxu0 0.0
  %586 = vmatprep.subr.mxu0 0.0
  %587 = vmatpush2.msra.mxu0 0.0
  %588 = vmatprep.subr.mxu0 0.0
  %589 = vmatpush2.msra.mxu0 0.0
  %590 = vmatprep.subr.mxu0 0.0
  %591 = vmatpush2.msra.mxu0 0.0
  %592 = vmatprep.subr.mxu0 0.0
  %593 = vmatpush2.msra.mxu0 0.0
  %594 = vmatprep.subr.mxu0 0.0
  %595 = vmatpush2.msra.mxu0 0.0
  %596 = vmatprep.subr.mxu0 0.0
  %597 = vmatpush2.msra.mxu0 0.0
  %598 = vmatprep.mubr.f32.mxu0 0.0
  %599 = vmatmul.mubr.f32.gmra.mxu0 %v450
  %v600 = vpop.f32.mrf.mxu0
  %v601 = vadd.f32 0.0, %v600
  %v602 = vpop.f32.mrf.mxu0
  %603 = vdwg.mxu0
  %v604 = vadd.f32 %v143, %v601
  %v605 = vxor.u32 %v604, 2147483648
  %v606 = vmul.f32 %v605, 1.442695
  %v607 = vpow.pop %v606
  %v608 = vadd.f32 %v607, 1.0
  %v609 = vrcp.pop %v608
  %v610 = vmul.f32 1.0, %v609
  %v611 = vtanh.pop %v604
  %v612 = vmul.f32 %v610, %v440
  %614 = vrot.lane.b32.xlu0 %v611, 64
  %v615 = vpop.permute.xlu0 %614
  %v617 = vmul.f32 %v610, %v615
  %619 = vrot.lane.b32.xlu0 %v617, 32
  %v620 = vpop.permute.xlu0 %619
  %v622 = vadd.f32 %v612, %v620
  %v623 = vtanh.pop %v622
  %625 = vrot.lane.b32.xlu0 %v623, 64
  %v626 = vpop.permute.xlu0 %625
  %v628 = vmul.f32 %v610, %v626
  %630 = vrot.lane.b32.xlu0 %v628, 32
  %v631 = vpop.permute.xlu0 %630
  %v632 = vsel %vm161, %v631, 0
  %634 = vmatprep.subr.mxu0 0.0
  %635 = vmatpush1.msra.mxu0 0.0
  %636 = vmatprep.subr.mxu0 0.0
  %637 = vmatpush1.msra.mxu0 0.0
  %638 = vmatprep.subr.mxu0 0.0
  %639 = vmatpush1.msra.mxu0 0.0
  %640 = vmatprep.subr.mxu0 0.0
  %641 = vmatpush1.msra.mxu0 0.0
  %642 = vmatprep.subr.mxu0 0.0
  %643 = vmatpush1.msra.mxu0 0.0
  %644 = vmatprep.subr.mxu0 0.0
  %645 = vmatpush1.msra.mxu0 0.0
  %646 = vmatprep.subr.mxu0 0.0
  %647 = vmatpush1.msra.mxu0 0.0
  %648 = vmatprep.subr.mxu0 0.0
  %649 = vmatpush1.msra.mxu0 0.0
  %650 = vmatprep.subr.mxu0 0.0
  %651 = vmatpush1.msra.mxu0 0.0
  %652 = vmatprep.subr.mxu0 0.0
  %653 = vmatpush1.msra.mxu0 0.0
  %654 = vmatprep.subr.mxu0 0.0
  %655 = vmatpush1.msra.mxu0 0.0
  %656 = vmatprep.subr.mxu0 0.0
  %657 = vmatpush1.msra.mxu0 0.0
  %658 = vmatprep.subr.mxu0 0.0
  %659 = vmatpush1.msra.mxu0 %v29
  %660 = vmatprep.subr.mxu0 0.0
  %661 = vmatpush1.msra.mxu0 %v28
  %662 = vmatprep.subr.mxu0 0.0
  %663 = vmatpush1.msra.mxu0 %v27
  %664 = vmatprep.subr.mxu0 0.0
  %665 = vmatpush1.msra.mxu0 %v26
  %666 = vmatprep.subr.mxu0 0.0
  %667 = vmatpush2.msra.mxu0 0.0
  %668 = vmatprep.subr.mxu0 0.0
  %669 = vmatpush2.msra.mxu0 0.0
  %670 = vmatprep.subr.mxu0 0.0
  %671 = vmatpush2.msra.mxu0 0.0
  %672 = vmatprep.subr.mxu0 0.0
  %673 = vmatpush2.msra.mxu0 0.0
  %674 = vmatprep.subr.mxu0 0.0
  %675 = vmatpush2.msra.mxu0 0.0
  %676 = vmatprep.subr.mxu0 0.0
  %677 = vmatpush2.msra.mxu0 0.0
  %678 = vmatprep.subr.mxu0 0.0
  %679 = vmatpush2.msra.mxu0 0.0
  %680 = vmatprep.subr.mxu0 0.0
  %681 = vmatpush2.msra.mxu0 0.0
  %682 = vmatprep.subr.mxu0 0.0
  %683 = vmatpush2.msra.mxu0 0.0
  %684 = vmatprep.subr.mxu0 0.0
  %685 = vmatpush2.msra.mxu0 0.0
  %686 = vmatprep.subr.mxu0 0.0
  %687 = vmatpush2.msra.mxu0 0.0
  %688 = vmatprep.subr.mxu0 0.0
  %689 = vmatpush2.msra.mxu0 0.0
  %690 = vmatprep.subr.mxu0 0.0
  %691 = vmatpush2.msra.mxu0 0.0
  %692 = vmatprep.subr.mxu0 0.0
  %693 = vmatpush2.msra.mxu0 0.0
  %694 = vmatprep.subr.mxu0 0.0
  %695 = vmatpush2.msra.mxu0 0.0
  %696 = vmatprep.subr.mxu0 0.0
  %697 = vmatpush2.msra.mxu0 0.0
  %698 = vmatprep.mubr.f32.mxu0 0.0
  %699 = vmatmul.mubr.f32.gmra.mxu0 %v632
  %v700 = vpop.f32.mrf.mxu0
  %v701 = vadd.f32 %v34, %v700
  %v702 = vpop.f32.mrf.mxu0
  %703 = vdwg.mxu0
  %v704 = vsel %vm339, %v701, -inf
  %705 = vmax.xlane.f32.xlu0 %v704
  %v706 = vpop.xlane.xlu0 %705
  %v707 = vsub.f32 %v701, %v706
  %v708 = vmul.f32 %v707, 1.442695
  %v709 = vpow.pop %v708
  %v710 = vsel %vm339, %v709, 0.0
  %711 = vadd.xlane.f32.xlu0 %v710
  %v712 = vpop.xlane.xlu0 %711
  %v713 = vrcp.pop %v712
  %v714 = vmul.f32 %v709, %v713
  %v715 = vadd.f32 %v533, %v714
  %716 = vmatprep.subr.mxu0 0.0
  %717 = vmatpush1.msra.mxu0 0.0
  %718 = vmatprep.subr.mxu0 0.0
  %719 = vmatpush1.msra.mxu0 0.0
  %720 = vmatprep.subr.mxu0 0.0
  %721 = vmatpush1.msra.mxu0 0.0
  %722 = vmatprep.subr.mxu0 0.0
  %723 = vmatpush1.msra.mxu0 0.0
  %724 = vmatprep.subr.mxu0 0.0
  %725 = vmatpush1.msra.mxu0 0.0
  %726 = vmatprep.subr.mxu0 0.0
  %727 = vmatpush1.msra.mxu0 0.0
  %728 = vmatprep.subr.mxu0 0.0
  %729 = vmatpush1.msra.mxu0 0.0
  %730 = vmatprep.subr.mxu0 0.0
  %731 = vmatpush1.msra.mxu0 0.0
  %732 = vmatprep.subr.mxu0 0.0
  %733 = vmatpush1.msra.mxu0 0.0
  %734 = vmatprep.subr.mxu0 0.0
  %735 = vmatpush1.msra.mxu0 0.0
  %736 = vmatprep.subr.mxu0 0.0
  %737 = vmatpush1.msra.mxu0 0.0
  %738 = vmatprep.subr.mxu0 0.0
  %739 = vmatpush1.msra.mxu0 0.0
  %740 = vmatprep.subr.mxu0 0.0
  %741 = vmatpush1.msra.mxu0 %v24
  %742 = vmatprep.subr.mxu0 0.0
  %743 = vmatpush1.msra.mxu0 %v23
  %744 = vmatprep.subr.mxu0 0.0
  %745 = vmatpush1.msra.mxu0 %v22
  %746 = vmatprep.subr.mxu0 0.0
  %747 = vmatpush1.msra.mxu0 %v21
  %748 = vmatprep.subr.mxu0 0.0
  %749 = vmatpush2.msra.mxu0 0.0
  %750 = vmatprep.subr.mxu0 0.0
  %751 = vmatpush2.msra.mxu0 0.0
  %752 = vmatprep.subr.mxu0 0.0
  %753 = vmatpush2.msra.mxu0 0.0
  %754 = vmatprep.subr.mxu0 0.0
  %755 = vmatpush2.msra.mxu0 0.0
  %756 = vmatprep.subr.mxu0 0.0
  %757 = vmatpush2.msra.mxu0 0.0
  %758 = vmatprep.subr.mxu0 0.0
  %759 = vmatpush2.msra.mxu0 0.0
  %760 = vmatprep.subr.mxu0 0.0
  %761 = vmatpush2.msra.mxu0 0.0
  %762 = vmatprep.subr.mxu0 0.0
  %763 = vmatpush2.msra.mxu0 0.0
  %764 = vmatprep.subr.mxu0 0.0
  %765 = vmatpush2.msra.mxu0 0.0
  %766 = vmatprep.subr.mxu0 0.0
  %767 = vmatpush2.msra.mxu0 0.0
  %768 = vmatprep.subr.mxu0 0.0
  %769 = vmatpush2.msra.mxu0 0.0
  %770 = vmatprep.subr.mxu0 0.0
  %771 = vmatpush2.msra.mxu0 0.0
  %772 = vmatprep.subr.mxu0 0.0
  %773 = vmatpush2.msra.mxu0 0.0
  %774 = vmatprep.subr.mxu0 0.0
  %775 = vmatpush2.msra.mxu0 0.0
  %776 = vmatprep.subr.mxu0 0.0
  %777 = vmatpush2.msra.mxu0 0.0
  %778 = vmatprep.subr.mxu0 0.0
  %779 = vmatpush2.msra.mxu0 0.0
  %780 = vmatprep.mubr.f32.mxu0 0.0
  %781 = vmatmul.mubr.f32.gmra.mxu0 %v632
  %v782 = vpop.f32.mrf.mxu0
  %v783 = vadd.f32 0.0, %v782
  %v784 = vpop.f32.mrf.mxu0
  %785 = vdwg.mxu0
  %v786 = vadd.f32 %v148, %v783
  %v787 = vxor.u32 %v786, 2147483648
  %v788 = vmul.f32 %v787, 1.442695
  %v789 = vpow.pop %v788
  %v790 = vadd.f32 %v789, 1.0
  %v791 = vrcp.pop %v790
  %v792 = vmul.f32 1.0, %v791
  %v793 = vtanh.pop %v786
  %v794 = vmul.f32 %v792, %v622
  %796 = vrot.lane.b32.xlu0 %v793, 64
  %v797 = vpop.permute.xlu0 %796
  %v799 = vmul.f32 %v792, %v797
  %801 = vrot.lane.b32.xlu0 %v799, 32
  %v802 = vpop.permute.xlu0 %801
  %v804 = vadd.f32 %v794, %v802
  %v805 = vtanh.pop %v804
  %807 = vrot.lane.b32.xlu0 %v805, 64
  %v808 = vpop.permute.xlu0 %807
  %v810 = vmul.f32 %v792, %v808
  %812 = vrot.lane.b32.xlu0 %v810, 32
  %v813 = vpop.permute.xlu0 %812
  %v814 = vsel %vm161, %v813, 0
  %816 = vmatprep.subr.mxu0 0.0
  %817 = vmatpush1.msra.mxu0 0.0
  %818 = vmatprep.subr.mxu0 0.0
  %819 = vmatpush1.msra.mxu0 0.0
  %820 = vmatprep.subr.mxu0 0.0
  %821 = vmatpush1.msra.mxu0 0.0
  %822 = vmatprep.subr.mxu0 0.0
  %823 = vmatpush1.msra.mxu0 0.0
  %824 = vmatprep.subr.mxu0 0.0
  %825 = vmatpush1.msra.mxu0 0.0
  %826 = vmatprep.subr.mxu0 0.0
  %827 = vmatpush1.msra.mxu0 0.0
  %828 = vmatprep.subr.mxu0 0.0
  %829 = vmatpush1.msra.mxu0 0.0
  %830 = vmatprep.subr.mxu0 0.0
  %831 = vmatpush1.msra.mxu0 0.0
  %832 = vmatprep.subr.mxu0 0.0
  %833 = vmatpush1.msra.mxu0 0.0
  %834 = vmatprep.subr.mxu0 0.0
  %835 = vmatpush1.msra.mxu0 0.0
  %836 = vmatprep.subr.mxu0 0.0
  %837 = vmatpush1.msra.mxu0 0.0
  %838 = vmatprep.subr.mxu0 0.0
  %839 = vmatpush1.msra.mxu0 0.0
  %840 = vmatprep.subr.mxu0 0.0
  %841 = vmatpush1.msra.mxu0 %v29
  %842 = vmatprep.subr.mxu0 0.0
  %843 = vmatpush1.msra.mxu0 %v28
  %844 = vmatprep.subr.mxu0 0.0
  %845 = vmatpush1.msra.mxu0 %v27
  %846 = vmatprep.subr.mxu0 0.0
  %847 = vmatpush1.msra.mxu0 %v26
  %848 = vmatprep.subr.mxu0 0.0
  %849 = vmatpush2.msra.mxu0 0.0
  %850 = vmatprep.subr.mxu0 0.0
  %851 = vmatpush2.msra.mxu0 0.0
  %852 = vmatprep.subr.mxu0 0.0
  %853 = vmatpush2.msra.mxu0 0.0
  %854 = vmatprep.subr.mxu0 0.0
  %855 = vmatpush2.msra.mxu0 0.0
  %856 = vmatprep.subr.mxu0 0.0
  %857 = vmatpush2.msra.mxu0 0.0
  %858 = vmatprep.subr.mxu0 0.0
  %859 = vmatpush2.msra.mxu0 0.0
  %860 = vmatprep.subr.mxu0 0.0
  %861 = vmatpush2.msra.mxu0 0.0
  %862 = vmatprep.subr.mxu0 0.0
  %863 = vmatpush2.msra.mxu0 0.0
  %864 = vmatprep.subr.mxu0 0.0
  %865 = vmatpush2.msra.mxu0 0.0
  %866 = vmatprep.subr.mxu0 0.0
  %867 = vmatpush2.msra.mxu0 0.0
  %868 = vmatprep.subr.mxu0 0.0
  %869 = vmatpush2.msra.mxu0 0.0
  %870 = vmatprep.subr.mxu0 0.0
  %871 = vmatpush2.msra.mxu0 0.0
  %872 = vmatprep.subr.mxu0 0.0
  %873 = vmatpush2.msra.mxu0 0.0
  %874 = vmatprep.subr.mxu0 0.0
  %875 = vmatpush2.msra.mxu0 0.0
  %876 = vmatprep.subr.mxu0 0.0
  %877 = vmatpush2.msra.mxu0 0.0
  %878 = vmatprep.subr.mxu0 0.0
  %879 = vmatpush2.msra.mxu0 0.0
  %880 = vmatprep.mubr.f32.mxu0 0.0
  %881 = vmatmul.mubr.f32.gmra.mxu0 %v814
  %v882 = vpop.f32.mrf.mxu0
  %v883 = vadd.f32 %v34, %v882
  %v884 = vpop.f32.mrf.mxu0
  %885 = vdwg.mxu0
  %v886 = vsel %vm339, %v883, -inf
  %887 = vmax.xlane.f32.xlu0 %v886
  %v888 = vpop.xlane.xlu0 %887
  %v889 = vsub.f32 %v883, %v888
  %v890 = vmul.f32 %v889, 1.442695
  %v891 = vpow.pop %v890
  %v892 = vsel %vm339, %v891, 0.0
  %893 = vadd.xlane.f32.xlu0 %v892
  %v894 = vpop.xlane.xlu0 %893
  %v895 = vrcp.pop %v894
  %v896 = vmul.f32 %v891, %v895
  %v897 = vadd.f32 %v715, %v896
  %898 = vmatprep.subr.mxu0 0.0
  %899 = vmatpush1.msra.mxu0 0.0
  %900 = vmatprep.subr.mxu0 0.0
  %901 = vmatpush1.msra.mxu0 0.0
  %902 = vmatprep.subr.mxu0 0.0
  %903 = vmatpush1.msra.mxu0 0.0
  %904 = vmatprep.subr.mxu0 0.0
  %905 = vmatpush1.msra.mxu0 0.0
  %906 = vmatprep.subr.mxu0 0.0
  %907 = vmatpush1.msra.mxu0 0.0
  %908 = vmatprep.subr.mxu0 0.0
  %909 = vmatpush1.msra.mxu0 0.0
  %910 = vmatprep.subr.mxu0 0.0
  %911 = vmatpush1.msra.mxu0 0.0
  %912 = vmatprep.subr.mxu0 0.0
  %913 = vmatpush1.msra.mxu0 0.0
  %914 = vmatprep.subr.mxu0 0.0
  %915 = vmatpush1.msra.mxu0 0.0
  %916 = vmatprep.subr.mxu0 0.0
  %917 = vmatpush1.msra.mxu0 0.0
  %918 = vmatprep.subr.mxu0 0.0
  %919 = vmatpush1.msra.mxu0 0.0
  %920 = vmatprep.subr.mxu0 0.0
  %921 = vmatpush1.msra.mxu0 0.0
  %922 = vmatprep.subr.mxu0 0.0
  %923 = vmatpush1.msra.mxu0 %v24
  %924 = vmatprep.subr.mxu0 0.0
  %925 = vmatpush1.msra.mxu0 %v23
  %926 = vmatprep.subr.mxu0 0.0
  %927 = vmatpush1.msra.mxu0 %v22
  %928 = vmatprep.subr.mxu0 0.0
  %929 = vmatpush1.msra.mxu0 %v21
  %930 = vmatprep.subr.mxu0 0.0
  %931 = vmatpush2.msra.mxu0 0.0
  %932 = vmatprep.subr.mxu0 0.0
  %933 = vmatpush2.msra.mxu0 0.0
  %934 = vmatprep.subr.mxu0 0.0
  %935 = vmatpush2.msra.mxu0 0.0
  %936 = vmatprep.subr.mxu0 0.0
  %937 = vmatpush2.msra.mxu0 0.0
  %938 = vmatprep.subr.mxu0 0.0
  %939 = vmatpush2.msra.mxu0 0.0
  %940 = vmatprep.subr.mxu0 0.0
  %941 = vmatpush2.msra.mxu0 0.0
  %942 = vmatprep.subr.mxu0 0.0
  %943 = vmatpush2.msra.mxu0 0.0
  %944 = vmatprep.subr.mxu0 0.0
  %945 = vmatpush2.msra.mxu0 0.0
  %946 = vmatprep.subr.mxu0 0.0
  %947 = vmatpush2.msra.mxu0 0.0
  %948 = vmatprep.subr.mxu0 0.0
  %949 = vmatpush2.msra.mxu0 0.0
  %950 = vmatprep.subr.mxu0 0.0
  %951 = vmatpush2.msra.mxu0 0.0
  %952 = vmatprep.subr.mxu0 0.0
  %953 = vmatpush2.msra.mxu0 0.0
  %954 = vmatprep.subr.mxu0 0.0
  %955 = vmatpush2.msra.mxu0 0.0
  %956 = vmatprep.subr.mxu0 0.0
  %957 = vmatpush2.msra.mxu0 0.0
  %958 = vmatprep.subr.mxu0 0.0
  %959 = vmatpush2.msra.mxu0 0.0
  %960 = vmatprep.subr.mxu0 0.0
  %961 = vmatpush2.msra.mxu0 0.0
  %962 = vmatprep.mubr.f32.mxu0 0.0
  %963 = vmatmul.mubr.f32.gmra.mxu0 %v814
  %v964 = vpop.f32.mrf.mxu0
  %v965 = vadd.f32 0.0, %v964
  %v966 = vpop.f32.mrf.mxu0
  %967 = vdwg.mxu0
  %v968 = vadd.f32 %v153, %v965
  %v969 = vxor.u32 %v968, 2147483648
  %v970 = vmul.f32 %v969, 1.442695
  %v971 = vpow.pop %v970
  %v972 = vadd.f32 %v971, 1.0
  %v973 = vrcp.pop %v972
  %v974 = vmul.f32 1.0, %v973
  %v975 = vtanh.pop %v968
  %v976 = vmul.f32 %v974, %v804
  %978 = vrot.lane.b32.xlu0 %v975, 64
  %v979 = vpop.permute.xlu0 %978
  %v981 = vmul.f32 %v974, %v979
  %983 = vrot.lane.b32.xlu0 %v981, 32
  %v984 = vpop.permute.xlu0 %983
  %v986 = vadd.f32 %v976, %v984
  %v987 = vtanh.pop %v986
  %989 = vrot.lane.b32.xlu0 %v987, 64
  %v990 = vpop.permute.xlu0 %989
  %v992 = vmul.f32 %v974, %v990
  %994 = vrot.lane.b32.xlu0 %v992, 32
  %v995 = vpop.permute.xlu0 %994
  %v996 = vsel %vm161, %v995, 0
  %998 = vmatprep.subr.mxu0 0.0
  %999 = vmatpush1.msra.mxu0 0.0
  %1000 = vmatprep.subr.mxu0 0.0
  %1001 = vmatpush1.msra.mxu0 0.0
  %1002 = vmatprep.subr.mxu0 0.0
  %1003 = vmatpush1.msra.mxu0 0.0
  %1004 = vmatprep.subr.mxu0 0.0
  %1005 = vmatpush1.msra.mxu0 0.0
  %1006 = vmatprep.subr.mxu0 0.0
  %1007 = vmatpush1.msra.mxu0 0.0
  %1008 = vmatprep.subr.mxu0 0.0
  %1009 = vmatpush1.msra.mxu0 0.0
  %1010 = vmatprep.subr.mxu0 0.0
  %1011 = vmatpush1.msra.mxu0 0.0
  %1012 = vmatprep.subr.mxu0 0.0
  %1013 = vmatpush1.msra.mxu0 0.0
  %1014 = vmatprep.subr.mxu0 0.0
  %1015 = vmatpush1.msra.mxu0 0.0
  %1016 = vmatprep.subr.mxu0 0.0
  %1017 = vmatpush1.msra.mxu0 0.0
  %1018 = vmatprep.subr.mxu0 0.0
  %1019 = vmatpush1.msra.mxu0 0.0
  %1020 = vmatprep.subr.mxu0 0.0
  %1021 = vmatpush1.msra.mxu0 0.0
  %1022 = vmatprep.subr.mxu0 0.0
  %1023 = vmatpush1.msra.mxu0 %v29
  %1024 = vmatprep.subr.mxu0 0.0
  %1025 = vmatpush1.msra.mxu0 %v28
  %1026 = vmatprep.subr.mxu0 0.0
  %1027 = vmatpush1.msra.mxu0 %v27
  %1028 = vmatprep.subr.mxu0 0.0
  %1029 = vmatpush1.msra.mxu0 %v26
  %1030 = vmatprep.subr.mxu0 0.0
  %1031 = vmatpush2.msra.mxu0 0.0
  %1032 = vmatprep.subr.mxu0 0.0
  %1033 = vmatpush2.msra.mxu0 0.0
  %1034 = vmatprep.subr.mxu0 0.0
  %1035 = vmatpush2.msra.mxu0 0.0
  %1036 = vmatprep.subr.mxu0 0.0
  %1037 = vmatpush2.msra.mxu0 0.0
  %1038 = vmatprep.subr.mxu0 0.0
  %1039 = vmatpush2.msra.mxu0 0.0
  %1040 = vmatprep.subr.mxu0 0.0
  %1041 = vmatpush2.msra.mxu0 0.0
  %1042 = vmatprep.subr.mxu0 0.0
  %1043 = vmatpush2.msra.mxu0 0.0
  %1044 = vmatprep.subr.mxu0 0.0
  %1045 = vmatpush2.msra.mxu0 0.0
  %1046 = vmatprep.subr.mxu0 0.0
  %1047 = vmatpush2.msra.mxu0 0.0
  %1048 = vmatprep.subr.mxu0 0.0
  %1049 = vmatpush2.msra.mxu0 0.0
  %1050 = vmatprep.subr.mxu0 0.0
  %1051 = vmatpush2.msra.mxu0 0.0
  %1052 = vmatprep.subr.mxu0 0.0
  %1053 = vmatpush2.msra.mxu0 0.0
  %1054 = vmatprep.subr.mxu0 0.0
  %1055 = vmatpush2.msra.mxu0 0.0
  %1056 = vmatprep.subr.mxu0 0.0
  %1057 = vmatpush2.msra.mxu0 0.0
  %1058 = vmatprep.subr.mxu0 0.0
  %1059 = vmatpush2.msra.mxu0 0.0
  %1060 = vmatprep.subr.mxu0 0.0
  %1061 = vmatpush2.msra.mxu0 0.0
  %1062 = vmatprep.mubr.f32.mxu0 0.0
  %1063 = vmatmul.mubr.f32.gmra.mxu0 %v996
  %v1064 = vpop.f32.mrf.mxu0
  %v1065 = vadd.f32 %v34, %v1064
  %v1066 = vpop.f32.mrf.mxu0
  %1067 = vdwg.mxu0
  %v1068 = vsel %vm339, %v1065, -inf
  %1069 = vmax.xlane.f32.xlu0 %v1068
  %v1070 = vpop.xlane.xlu0 %1069
  %v1071 = vsub.f32 %v1065, %v1070
  %v1072 = vmul.f32 %v1071, 1.442695
  %v1073 = vpow.pop %v1072
  %v1074 = vsel %vm339, %v1073, 0.0
  %1075 = vadd.xlane.f32.xlu0 %v1074
  %v1076 = vpop.xlane.xlu0 %1075
  %v1077 = vrcp.pop %v1076
  %v1078 = vmul.f32 %v1073, %v1077
  %v1079 = vadd.f32 %v897, %v1078
  %1080 = vmatprep.subr.mxu0 0.0
  %1081 = vmatpush1.msra.mxu0 0.0
  %1082 = vmatprep.subr.mxu0 0.0
  %1083 = vmatpush1.msra.mxu0 0.0
  %1084 = vmatprep.subr.mxu0 0.0
  %1085 = vmatpush1.msra.mxu0 0.0
  %1086 = vmatprep.subr.mxu0 0.0
  %1087 = vmatpush1.msra.mxu0 0.0
  %1088 = vmatprep.subr.mxu0 0.0
  %1089 = vmatpush1.msra.mxu0 0.0
  %1090 = vmatprep.subr.mxu0 0.0
  %1091 = vmatpush1.msra.mxu0 0.0
  %1092 = vmatprep.subr.mxu0 0.0
  %1093 = vmatpush1.msra.mxu0 0.0
  %1094 = vmatprep.subr.mxu0 0.0
  %1095 = vmatpush1.msra.mxu0 0.0
  %1096 = vmatprep.subr.mxu0 0.0
  %1097 = vmatpush1.msra.mxu0 0.0
  %1098 = vmatprep.subr.mxu0 0.0
  %1099 = vmatpush1.msra.mxu0 0.0
  %1100 = vmatprep.subr.mxu0 0.0
  %1101 = vmatpush1.msra.mxu0 0.0
  %1102 = vmatprep.subr.mxu0 0.0
  %1103 = vmatpush1.msra.mxu0 0.0
  %1104 = vmatprep.subr.mxu0 0.0
  %1105 = vmatpush1.msra.mxu0 %v24
  %1106 = vmatprep.subr.mxu0 0.0
  %1107 = vmatpush1.msra.mxu0 %v23
  %1108 = vmatprep.subr.mxu0 0.0
  %1109 = vmatpush1.msra.mxu0 %v22
  %1110 = vmatprep.subr.mxu0 0.0
  %1111 = vmatpush1.msra.mxu0 %v21
  %1112 = vmatprep.subr.mxu0 0.0
  %1113 = vmatpush2.msra.mxu0 0.0
  %1114 = vmatprep.subr.mxu0 0.0
  %1115 = vmatpush2.msra.mxu0 0.0
  %1116 = vmatprep.subr.mxu0 0.0
  %1117 = vmatpush2.msra.mxu0 0.0
  %1118 = vmatprep.subr.mxu0 0.0
  %1119 = vmatpush2.msra.mxu0 0.0
  %1120 = vmatprep.subr.mxu0 0.0
  %1121 = vmatpush2.msra.mxu0 0.0
  %1122 = vmatprep.subr.mxu0 0.0
  %1123 = vmatpush2.msra.mxu0 0.0
  %1124 = vmatprep.subr.mxu0 0.0
  %1125 = vmatpush2.msra.mxu0 0.0
  %1126 = vmatprep.subr.mxu0 0.0
  %1127 = vmatpush2.msra.mxu0 0.0
  %1128 = vmatprep.subr.mxu0 0.0
  %1129 = vmatpush2.msra.mxu0 0.0
  %1130 = vmatprep.subr.mxu0 0.0
  %1131 = vmatpush2.msra.mxu0 0.0
  %1132 = vmatprep.subr.mxu0 0.0
  %1133 = vmatpush2.msra.mxu0 0.0
  %1134 = vmatprep.subr.mxu0 0.0
  %1135 = vmatpush2.msra.mxu0 0.0
  %1136 = vmatprep.subr.mxu0 0.0
  %1137 = vmatpush2.msra.mxu0 0.0
  %1138 = vmatprep.subr.mxu0 0.0
  %1139 = vmatpush2.msra.mxu0 0.0
  %1140 = vmatprep.subr.mxu0 0.0
  %1141 = vmatpush2.msra.mxu0 0.0
  %1142 = vmatprep.subr.mxu0 0.0
  %1143 = vmatpush2.msra.mxu0 0.0
  %1144 = vmatprep.mubr.f32.mxu0 0.0
  %1145 = vmatmul.mubr.f32.gmra.mxu0 %v996
  %v1146 = vpop.f32.mrf.mxu0
  %v1147 = vadd.f32 0.0, %v1146
  %v1148 = vpop.f32.mrf.mxu0
  %1149 = vdwg.mxu0
  %v1150 = vadd.f32 %v158, %v1147
  %v1151 = vxor.u32 %v1150, 2147483648
  %v1152 = vmul.f32 %v1151, 1.442695
  %v1153 = vpow.pop %v1152
  %v1154 = vadd.f32 %v1153, 1.0
  %v1155 = vrcp.pop %v1154
  %v1156 = vmul.f32 1.0, %v1155
  %v1157 = vtanh.pop %v1150
  %v1158 = vmul.f32 %v1156, %v986
  %1160 = vrot.lane.b32.xlu0 %v1157, 64
  %v1161 = vpop.permute.xlu0 %1160
  %v1163 = vmul.f32 %v1156, %v1161
  %1165 = vrot.lane.b32.xlu0 %v1163, 32
  %v1166 = vpop.permute.xlu0 %1165
  %v1168 = vadd.f32 %v1158, %v1166
  %v1169 = vtanh.pop %v1168
  %1171 = vrot.lane.b32.xlu0 %v1169, 64
  %v1172 = vpop.permute.xlu0 %1171
  %v1174 = vmul.f32 %v1156, %v1172
  %1176 = vrot.lane.b32.xlu0 %v1174, 32
  %v1177 = vpop.permute.xlu0 %1176
  %v1178 = vsel %vm161, %v1177, 0
  %1180 = vmatprep.subr.mxu0 0.0
  %1181 = vmatpush1.msra.mxu0 0.0
  %1182 = vmatprep.subr.mxu0 0.0
  %1183 = vmatpush1.msra.mxu0 0.0
  %1184 = vmatprep.subr.mxu0 0.0
  %1185 = vmatpush1.msra.mxu0 0.0
  %1186 = vmatprep.subr.mxu0 0.0
  %1187 = vmatpush1.msra.mxu0 0.0
  %1188 = vmatprep.subr.mxu0 0.0
  %1189 = vmatpush1.msra.mxu0 0.0
  %1190 = vmatprep.subr.mxu0 0.0
  %1191 = vmatpush1.msra.mxu0 0.0
  %1192 = vmatprep.subr.mxu0 0.0
  %1193 = vmatpush1.msra.mxu0 0.0
  %1194 = vmatprep.subr.mxu0 0.0
  %1195 = vmatpush1.msra.mxu0 0.0
  %1196 = vmatprep.subr.mxu0 0.0
  %1197 = vmatpush1.msra.mxu0 0.0
  %1198 = vmatprep.subr.mxu0 0.0
  %1199 = vmatpush1.msra.mxu0 0.0
  %1200 = vmatprep.subr.mxu0 0.0
  %1201 = vmatpush1.msra.mxu0 0.0
  %1202 = vmatprep.subr.mxu0 0.0
  %1203 = vmatpush1.msra.mxu0 0.0
  %1204 = vmatprep.subr.mxu0 0.0
  %1205 = vmatpush1.msra.mxu0 %v29
  %1206 = vmatprep.subr.mxu0 0.0
  %1207 = vmatpush1.msra.mxu0 %v28
  %1208 = vmatprep.subr.mxu0 0.0
  %1209 = vmatpush1.msra.mxu0 %v27
  %1210 = vmatprep.subr.mxu0 0.0
  %1211 = vmatpush1.msra.mxu0 %v26
  %1212 = vmatprep.subr.mxu0 0.0
  %1213 = vmatpush2.msra.mxu0 0.0
  %1214 = vmatprep.subr.mxu0 0.0
  %1215 = vmatpush2.msra.mxu0 0.0
  %1216 = vmatprep.subr.mxu0 0.0
  %1217 = vmatpush2.msra.mxu0 0.0
  %1218 = vmatprep.subr.mxu0 0.0
  %1219 = vmatpush2.msra.mxu0 0.0
  %1220 = vmatprep.subr.mxu0 0.0
  %1221 = vmatpush2.msra.mxu0 0.0
  %1222 = vmatprep.subr.mxu0 0.0
  %1223 = vmatpush2.msra.mxu0 0.0
  %1224 = vmatprep.subr.mxu0 0.0
  %1225 = vmatpush2.msra.mxu0 0.0
  %1226 = vmatprep.subr.mxu0 0.0
  %1227 = vmatpush2.msra.mxu0 0.0
  %1228 = vmatprep.subr.mxu0 0.0
  %1229 = vmatpush2.msra.mxu0 0.0
  %1230 = vmatprep.subr.mxu0 0.0
  %1231 = vmatpush2.msra.mxu0 0.0
  %1232 = vmatprep.subr.mxu0 0.0
  %1233 = vmatpush2.msra.mxu0 0.0
  %1234 = vmatprep.subr.mxu0 0.0
  %1235 = vmatpush2.msra.mxu0 0.0
  %1236 = vmatprep.subr.mxu0 0.0
  %1237 = vmatpush2.msra.mxu0 0.0
  %1238 = vmatprep.subr.mxu0 0.0
  %1239 = vmatpush2.msra.mxu0 0.0
  %1240 = vmatprep.subr.mxu0 0.0
  %1241 = vmatpush2.msra.mxu0 0.0
  %1242 = vmatprep.subr.mxu0 0.0
  %1243 = vmatpush2.msra.mxu0 0.0
  %1244 = vmatprep.mubr.f32.mxu0 0.0
  %1245 = vmatmul.mubr.f32.gmra.mxu0 %v1178
  %v1246 = vpop.f32.mrf.mxu0
  %v1247 = vadd.f32 %v34, %v1246
  %v1248 = vpop.f32.mrf.mxu0
  %1249 = vdwg.mxu0
  %v1250 = vsel %vm339, %v1247, -inf
  %1251 = vmax.xlane.f32.xlu0 %v1250
  %v1252 = vpop.xlane.xlu0 %1251
  %v1253 = vsub.f32 %v1247, %v1252
  %v1254 = vmul.f32 %v1253, 1.442695
  %v1255 = vpow.pop %v1254
  %v1256 = vsel %vm339, %v1255, 0.0
  %1257 = vadd.xlane.f32.xlu0 %v1256
  %v1258 = vpop.xlane.xlu0 %1257
  %v1259 = vrcp.pop %v1258
  %v1260 = vmul.f32 %v1255, %v1259
  %v1261 = vadd.f32 %v1079, %v1260
  %v1262 = vld [vmem:[%s1] sm:$0xff]
  %v1263 = vld [vmem:[%s1 + $0x8] sm:$0xff]
  %v1264 = vld [vmem:[%s1 + $0x10] sm:$0xff]
  %v1265 = vld [vmem:[%s1 + $0x18] sm:$0xff]
  %v1267 = vsel %vm161, %v1262, 0
  %v1270 = vsel %vm161, %v1263, 0
  %v1273 = vsel %vm161, %v1264, 0
  %v1276 = vsel %vm161, %v1265, 0
  %1278 = vmatprep.subr.mxu0 0.0
  %1279 = vmatpush1.msra.mxu0 0.0
  %1280 = vmatprep.subr.mxu0 0.0
  %1281 = vmatpush1.msra.mxu0 0.0
  %1282 = vmatprep.subr.mxu0 0.0
  %1283 = vmatpush1.msra.mxu0 0.0
  %1284 = vmatprep.subr.mxu0 0.0
  %1285 = vmatpush1.msra.mxu0 0.0
  %1286 = vmatprep.subr.mxu0 0.0
  %1287 = vmatpush1.msra.mxu0 0.0
  %1288 = vmatprep.subr.mxu0 0.0
  %1289 = vmatpush1.msra.mxu0 0.0
  %1290 = vmatprep.subr.mxu0 0.0
  %1291 = vmatpush1.msra.mxu0 0.0
  %1292 = vmatprep.subr.mxu0 0.0
  %1293 = vmatpush1.msra.mxu0 0.0
  %1294 = vmatprep.subr.mxu0 0.0
  %1295 = vmatpush1.msra.mxu0 0.0
  %1296 = vmatprep.subr.mxu0 0.0
  %1297 = vmatpush1.msra.mxu0 0.0
  %1298 = vmatprep.subr.mxu0 0.0
  %1299 = vmatpush1.msra.mxu0 0.0
  %1300 = vmatprep.subr.mxu0 0.0
  %1301 = vmatpush1.msra.mxu0 0.0
  %1302 = vmatprep.subr.mxu0 0.0
  %1303 = vmatpush1.msra.mxu0 %v29
  %1304 = vmatprep.subr.mxu0 0.0
  %1305 = vmatpush1.msra.mxu0 %v28
  %1306 = vmatprep.subr.mxu0 0.0
  %1307 = vmatpush1.msra.mxu0 %v27
  %1308 = vmatprep.subr.mxu0 0.0
  %1309 = vmatpush1.msra.mxu0 %v26
  %1310 = vmatprep.subr.mxu0 0.0
  %1311 = vmatpush2.msra.mxu0 0.0
  %1312 = vmatprep.subr.mxu0 0.0
  %1313 = vmatpush2.msra.mxu0 0.0
  %1314 = vmatprep.subr.mxu0 0.0
  %1315 = vmatpush2.msra.mxu0 0.0
  %1316 = vmatprep.subr.mxu0 0.0
  %1317 = vmatpush2.msra.mxu0 0.0
  %1318 = vmatprep.subr.mxu0 0.0
  %1319 = vmatpush2.msra.mxu0 0.0
  %1320 = vmatprep.subr.mxu0 0.0
  %1321 = vmatpush2.msra.mxu0 0.0
  %1322 = vmatprep.subr.mxu0 0.0
  %1323 = vmatpush2.msra.mxu0 0.0
  %1324 = vmatprep.subr.mxu0 0.0
  %1325 = vmatpush2.msra.mxu0 0.0
  %1326 = vmatprep.subr.mxu0 0.0
  %1327 = vmatpush2.msra.mxu0 0.0
  %1328 = vmatprep.subr.mxu0 0.0
  %1329 = vmatpush2.msra.mxu0 0.0
  %1330 = vmatprep.subr.mxu0 0.0
  %1331 = vmatpush2.msra.mxu0 0.0
  %1332 = vmatprep.subr.mxu0 0.0
  %1333 = vmatpush2.msra.mxu0 0.0
  %1334 = vmatprep.subr.mxu0 0.0
  %1335 = vmatpush2.msra.mxu0 0.0
  %1336 = vmatprep.subr.mxu0 0.0
  %1337 = vmatpush2.msra.mxu0 0.0
  %1338 = vmatprep.subr.mxu0 0.0
  %1339 = vmatpush2.msra.mxu0 0.0
  %1340 = vmatprep.subr.mxu0 0.0
  %1341 = vmatpush2.msra.mxu0 0.0
  %1342 = vmatprep.mubr.f32.mxu0 0.0
  %1343 = vmatmul.mubr.f32.gmra.mxu0 %v1267
  %v1344 = vpop.f32.mrf.mxu0
  %v1345 = vadd.f32 %v34, %v1344
  %v1346 = vpop.f32.mrf.mxu0
  %1347 = vmatprep.mubr.f32.mxu0 0.0
  %1348 = vmatmul.mubr.f32.gmra.mxu0 %v1270
  %v1349 = vpop.f32.mrf.mxu0
  %v1350 = vadd.f32 %v34, %v1349
  %v1351 = vpop.f32.mrf.mxu0
  %1352 = vmatprep.mubr.f32.mxu0 0.0
  %1353 = vmatmul.mubr.f32.gmra.mxu0 %v1273
  %v1354 = vpop.f32.mrf.mxu0
  %v1355 = vadd.f32 %v34, %v1354
  %v1356 = vpop.f32.mrf.mxu0
  %1357 = vmatprep.mubr.f32.mxu0 0.0
  %1358 = vmatmul.mubr.f32.gmra.mxu0 %v1276
  %v1359 = vpop.f32.mrf.mxu0
  %v1360 = vadd.f32 %v34, %v1359
  %v1361 = vpop.f32.mrf.mxu0
  %1362 = vdwg.mxu0
  %v1363 = vsel %vm339, %v1345, -inf
  %1364 = vmax.xlane.f32.xlu0 %v1363
  %v1365 = vpop.xlane.xlu0 %1364
  %v1366 = vsel %vm339, %v1350, -inf
  %1367 = vmax.xlane.f32.xlu0 %v1366
  %v1368 = vpop.xlane.xlu0 %1367
  %v1369 = vsel %vm339, %v1355, -inf
  %1370 = vmax.xlane.f32.xlu0 %v1369
  %v1371 = vpop.xlane.xlu0 %1370
  %v1372 = vsel %vm339, %v1360, -inf
  %1373 = vmax.xlane.f32.xlu0 %v1372
  %v1374 = vpop.xlane.xlu0 %1373
  %v1375 = vsub.f32 %v1345, %v1365
  %v1376 = vsub.f32 %v1350, %v1368
  %v1377 = vsub.f32 %v1355, %v1371
  %v1378 = vsub.f32 %v1360, %v1374
  %v1379 = vmul.f32 %v1375, 1.442695
  %v1380 = vpow.pop %v1379
  %v1381 = vmul.f32 %v1376, 1.442695
  %v1382 = vpow.pop %v1381
  %v1383 = vmul.f32 %v1377, 1.442695
  %v1384 = vpow.pop %v1383
  %v1385 = vmul.f32 %v1378, 1.442695
  %v1386 = vpow.pop %v1385
  %v1387 = vsel %vm339, %v1380, 0.0
  %1388 = vadd.xlane.f32.xlu0 %v1387
  %v1389 = vpop.xlane.xlu0 %1388
  %v1390 = vsel %vm339, %v1382, 0.0
  %1391 = vadd.xlane.f32.xlu0 %v1390
  %v1392 = vpop.xlane.xlu0 %1391
  %v1393 = vsel %vm339, %v1384, 0.0
  %1394 = vadd.xlane.f32.xlu0 %v1393
  %v1395 = vpop.xlane.xlu0 %1394
  %v1396 = vsel %vm339, %v1386, 0.0
  %1397 = vadd.xlane.f32.xlu0 %v1396
  %v1398 = vpop.xlane.xlu0 %1397
  %v1399 = vrcp.pop %v1389
  %v1400 = vmul.f32 %v1380, %v1399
  %v1401 = vrcp.pop %v1392
  %v1402 = vmul.f32 %v1382, %v1401
  %v1403 = vrcp.pop %v1395
  %v1404 = vmul.f32 %v1384, %v1403
  %v1405 = vrcp.pop %v1398
  %v1406 = vmul.f32 %v1386, %v1405
  %v1407 = vadd.f32 %v1261, %v1400
  %v1408 = vadd.f32 %v1407, %v1402
  %v1409 = vadd.f32 %v1408, %v1404
  %v1410 = vadd.f32 %v1409, %v1406
  %v1411 = vmul.f32 %v1410, 0.1
  %1412 = vst.msk [vmem:[%s5] sm:$0xff] %vm339, %v1411
  // Predicated region
  $region22: #{lstm_encoding_history_forward.1} parent=0 // pred_check
    _
  $region23: #{lstm_encoding_history_forward.1} parent=0 // pred_check_branch
    %1414 = sbr.rel (0) target = $region25
  $region24: #{lstm_encoding_history_forward.1} parent=0 // pred_region
    _
  $region25: #{lstm_encoding_history_forward.1} parent=0 // pred_fallthru
    _
  // Predicated region
  $region26: #{lstm_encoding_history_forward.1} parent=0 // pred_check
    _
  $region27: #{lstm_encoding_history_forward.1} parent=0 // pred_check_branch
    %1416 = sbr.rel (0) target = $region29
  $region28: #{lstm_encoding_history_forward.1} parent=0 // pred_region
    _
  $region29: #{lstm_encoding_history_forward.1} parent=0 // pred_fallthru
    _

</llo_original>
